<compile_context>
chip_gen: v7x
topology: tpu7x:2x2x1
jax: 0.10.0
libtpu: 0.0.40
codegen_flags: <defaults>
</compile_context>

<pallas_src>
import functools

import jax
import jax.numpy as jnp
from jax import lax
from jax.experimental import pallas as pl
from jax.experimental.pallas import tpu as pltpu

IN_CH, OUT_CH, KSIZE, STRIDE, OUT_PAD, PAD = 10, 3, 5, 2, 1, 2
NROWS_W = 16    # weight / accumulator rows: 12 real (3 ch x 4 parities) + 4 pad
NROWS_OUT = 12  # rows actually written to HBM


def _round_up(v, m):
    return (v + m - 1) // m * m


def _cdiv(a, b):
    return -(-a // b)


def _build_tap_weights(weight, bias):
    """weight: (C_in, C_out, 5, 5) PyTorch ConvTranspose2d layout; bias: (C_out,).

    Returns
      w9  : (9, 16, C_in) per-tap weight matrices; output row r = co*4 + py*2 + px
            (rows 12..15 zero padding); tap t = a*3 + b is the (a, b) offset into
            the 1-padded input window.
      b16 : (16, 1) per-row bias.

    out[co, 2h+py, 2w+px] = sum_{ci,a,b} W[ci,co,ky,kx] * x_pad[ci,h+a,w+b]
    with ky = 4-2a (py=0) / 5-2a (py=1), same for kx/b; invalid taps get 0.
    """
    c_in = weight.shape[0]
    w9 = jnp.zeros((9, NROWS_W, c_in), jnp.float32)
    b16 = jnp.zeros((NROWS_W, 1), jnp.float32)
    for co in range(OUT_CH):
        for py in range(2):
            for px in range(2):
                r = co * 4 + py * 2 + px
                b16 = b16.at[r, 0].set(bias[co])
                for a in range(3):
                    ky = 4 - 2 * a if py == 0 else 5 - 2 * a
                    if not 0 <= ky < KSIZE:
                        continue
                    for b in range(3):
                        kx = 4 - 2 * b if px == 0 else 5 - 2 * b
                        if not 0 <= kx < KSIZE:
                            continue
                        w9 = w9.at[a * 3 + b, r, :].set(weight[:, co, ky, kx])
    return w9, b16


def _enhancer_kernel(x_ref, w_ref, b_ref, o_ref, *, tm, k_sub, win, offs):
    # x_ref: (1, C_in, Lp)       whole flattened padded image of this batch elem
    # w_ref: (9, 16, C_in)       per-tap weights
    # b_ref: (16, 1)             per-row bias
    # o_ref: (1, 12, k_sub*tm)   lane-dense output block (rows = channel x parity)
    base = pl.program_id(1) * (k_sub * tm)

    def sub_tile(k, carry):
        start = pl.multiple_of(base + k * tm, 128)
        xw = x_ref[0, :, pl.ds(start, win)]            # (C_in, tm + 2*wp + 2)
        acc = jnp.zeros((NROWS_W, tm), jnp.float32)
        for t, off in enumerate(offs):                 # 9 taps, fully unrolled
            acc = acc + jnp.dot(w_ref[t], xw[:, off:off + tm],
                                preferred_element_type=jnp.float32)
        acc = acc + b_ref[...]                         # (16, 1) lane broadcast
        y = 0.5 + 0.5 * jnp.tanh(0.5 * acc)            # == sigmoid, one EUP op
        o_ref[0, :, pl.ds(pl.multiple_of(k * tm, 128), tm)] = y[:NROWS_OUT]
        return carry

    lax.fori_loop(0, k_sub, sub_tile, 0)


def simple_enhancer_forward(x, weight, bias, *, tm=512, sub_tiles=8):
    """x: (N, 10, H, W); weight: (10, 3, 5, 5) (PyTorch ConvTranspose2d layout);
    bias: (3,). Returns sigmoid(conv_transpose2d(x)) of shape (N, 3, 2H, 2W), NCHW."""
    n, c_in, h, w = x.shape
    assert c_in == IN_CH
    wp = w + 2
    m_out = h * wp                    # output cols per parity (incl. 2 junk / row)

    # Sub-tile / block geometry: each grid step covers k_sub sub-tiles of tm lanes.
    tm_eff = min(_round_up(tm, 128), _round_up(m_out, 128))
    num_tiles = _cdiv(m_out, tm_eff)
    num_blocks = _cdiv(num_tiles, sub_tiles)
    k_sub = _cdiv(num_tiles, num_blocks)
    block = k_sub * tm_eff
    m_pad = num_blocks * block

    # Single pad: 1-px zero border + extra bottom rows so the flattened slab
    # already contains the tail halo (max tap offset 2*wp + 2) past m_pad.
    lp_needed = m_pad + 2 * wp + 2
    extra_rows = max(0, _cdiv(lp_needed - (h + 2) * wp, wp))
    lp = (h + 2 + extra_rows) * wp
    x_pad = jnp.pad(x.astype(jnp.float32),
                    ((0, 0), (0, 0), (1, 1 + extra_rows), (1, 1)))
    x_flat = x_pad.reshape(n, c_in, lp)

    w9, b16 = _build_tap_weights(weight.astype(jnp.float32),
                                 bias.astype(jnp.float32))
    offs = tuple(a * wp + b for a in range(3) for b in range(3))

    kernel = functools.partial(_enhancer_kernel, tm=tm_eff, k_sub=k_sub,
                               win=tm_eff + 2 * wp + 2, offs=offs)

    # VMEM budget: double-buffered slab + output block + weights, plus headroom.
    slab_bytes = c_in * lp * 4
    out_block_bytes = NROWS_OUT * block * 4
    vmem_need = 2 * (slab_bytes + out_block_bytes + 9 * NROWS_W * c_in * 4) + (8 << 20)
    vmem_limit = int(min(max(vmem_need, 32 << 20), 100 << 20))

    out_k = pl.pallas_call(
        kernel,
        out_shape=jax.ShapeDtypeStruct((n, NROWS_OUT, m_pad), jnp.float32),
        grid_spec=pltpu.PrefetchScalarGridSpec(
            num_scalar_prefetch=0,
            grid=(n, num_blocks),
            in_specs=[
                pl.BlockSpec((1, c_in, lp), lambda i, j: (i, 0, 0)),        # x slab
                pl.BlockSpec((9, NROWS_W, c_in), lambda i, j: (0, 0, 0)),   # taps
                pl.BlockSpec((NROWS_W, 1), lambda i, j: (0, 0)),            # bias
            ],
            out_specs=pl.BlockSpec((1, NROWS_OUT, block), lambda i, j: (i, 0, j)),
        ),
        compiler_params=pltpu.CompilerParams(
            dimension_semantics=("arbitrary", "parallel"),
            vmem_limit_bytes=vmem_limit,
        ),
    )(x_flat, w9, b16)

    # (N, 12, m_pad) -> (N, 3, 2H, 2W): drop padded columns, interleave the
    # (py, px) parities into the spatial dims — one fused slice+transpose pass.
    out = out_k[:, :, :m_out].reshape(n, OUT_CH, 2, 2, h, wp)[..., :w]
    out = out.transpose(0, 1, 4, 2, 5, 3)
    return out.reshape(n, OUT_CH, 2 * h, 2 * w)


if __name__ == "__main__":
    key = jax.random.PRNGKey(0)
    kx, kw, kb = jax.random.split(key, 3)

    # Small deterministic example inputs (module fixes C_in=10, C_out=3).
    x = jax.random.normal(kx, (2, IN_CH, 16, 16), jnp.float32)
    fan_in = IN_CH * KSIZE * KSIZE
    bound = 1.0 / (fan_in ** 0.5)
    weight = jax.random.uniform(kw, (IN_CH, OUT_CH, KSIZE, KSIZE), jnp.float32,
                                minval=-bound, maxval=bound)
    bias = jax.random.uniform(kb, (OUT_CH,), jnp.float32, minval=-bound, maxval=bound)

    fwd = jax.jit(simple_enhancer_forward, static_argnames=("tm", "sub_tiles"))
    y = jax.block_until_ready(fwd(x, weight, bias))
    assert y.shape == (2, OUT_CH, 32, 32), y.shape

    # Reference: transposed conv via lhs-dilated conv_general_dilated + sigmoid.
    w_conv = jnp.flip(weight, axis=(2, 3)).transpose(1, 0, 2, 3)
    y_ref = lax.conv_general_dilated(
        x, w_conv, window_strides=(1, 1),
        padding=[(KSIZE - 1 - PAD, KSIZE - 1 - PAD + OUT_PAD)] * 2,
        lhs_dilation=(STRIDE, STRIDE),
        dimension_numbers=("NCHW", "OIHW", "NCHW"),
        precision=lax.Precision.HIGHEST)
    y_ref = jax.nn.sigmoid(y_ref + bias.reshape(1, OUT_CH, 1, 1))

    err = float(jnp.max(jnp.abs(y - y_ref)))
    assert jnp.allclose(y, y_ref, atol=2e-5, rtol=2e-5), err
    print("KERNEL_OK")
</pallas_src>

<mosaic_0001>
module attributes {stable_mosaic.version = 11 : i64} {
  func.func @_enhancer_kernel(%arg0: i32, %arg1: i32, %arg2: memref<1x10x432xf32, #tpu.memory_space<vmem>>, %arg3: memref<9x16x10xf32, #tpu.memory_space<vmem>>, %arg4: memref<16x1xf32, #tpu.memory_space<vmem>>, %arg5: memref<1x12x384xf32, #tpu.memory_space<vmem>>) attributes {dimension_semantics = [#tpu.dimension_semantics<arbitrary>, #tpu.dimension_semantics<parallel>], iteration_bounds = array<i64: 2, 1>, scalar_prefetch = 0 : i64, scratch_operands = 0 : i64, tpu.core_type = #tpu.core_type<tc>, window_params = [{transform_indices = @transform_0, window_bounds = array<i64: 1, 10, 432>}, {pipeline_mode = #tpu.pipeline_mode<synchronous>, transform_indices = @transform_1, window_bounds = array<i64: 9, 16, 10>}, {pipeline_mode = #tpu.pipeline_mode<synchronous>, transform_indices = @transform_2, window_bounds = array<i64: 16, 1>}, {transform_indices = @transform_3, window_bounds = array<i64: 1, 12, 384>}]} {
    %c384_i32 = arith.constant 384 : i32
    %0 = arith.muli %arg1, %c384_i32 : i32
    %c0_i32 = arith.constant 0 : i32
    %c384_i32_0 = arith.constant 384 : i32
    %1 = arith.muli %c0_i32, %c384_i32_0 : i32
    %2 = arith.addi %0, %1 : i32
    %3 = tpu.assume_multiple %2, 128 : i32
    %c0 = arith.constant 0 : index
    %c0_1 = arith.constant 0 : index
    %4 = arith.index_cast %3 : i32 to index
    %5 = vector.load %arg2[%c0, %c0_1, %4] : memref<1x10x432xf32, #tpu.memory_space<vmem>>, vector<1x10x422xf32>
    %6 = vector.shape_cast %5 : vector<1x10x422xf32> to vector<10x422xf32>
    %cst = arith.constant 0.000000e+00 : f32
    %7 = vector.broadcast %cst : f32 to vector<16x384xf32>
    %c0_2 = arith.constant 0 : index
    %c0_3 = arith.constant 0 : index
    %c0_4 = arith.constant 0 : index
    %8 = vector.load %arg3[%c0_2, %c0_3, %c0_4] : memref<9x16x10xf32, #tpu.memory_space<vmem>>, vector<1x16x10xf32>
    %9 = vector.shape_cast %8 : vector<1x16x10xf32> to vector<16x10xf32>
    %10 = vector.extract_strided_slice %6 {offsets = [0, 0], sizes = [10, 384], strides = [1, 1]} : vector<10x422xf32> to vector<10x384xf32>
    %cst_5 = arith.constant dense<0.000000e+00> : vector<16x384xf32>
    %11 = tpu.matmul %9, %10, %cst_5 {dimension_numbers = #tpu.dot_dimension_numbers<[1], [0], [0], [1], [0, 0, 1, 1], [], []>} : vector<16x10xf32>, vector<10x384xf32>, vector<16x384xf32> -> vector<16x384xf32>
    %12 = arith.addf %7, %11 : vector<16x384xf32>
    %c1 = arith.constant 1 : index
    %c0_6 = arith.constant 0 : index
    %c0_7 = arith.constant 0 : index
    %13 = vector.load %arg3[%c1, %c0_6, %c0_7] : memref<9x16x10xf32, #tpu.memory_space<vmem>>, vector<1x16x10xf32>
    %14 = vector.shape_cast %13 : vector<1x16x10xf32> to vector<16x10xf32>
    %15 = vector.extract_strided_slice %6 {offsets = [0, 1], sizes = [10, 384], strides = [1, 1]} : vector<10x422xf32> to vector<10x384xf32>
    %cst_8 = arith.constant dense<0.000000e+00> : vector<16x384xf32>
    %16 = tpu.matmul %14, %15, %cst_8 {dimension_numbers = #tpu.dot_dimension_numbers<[1], [0], [0], [1], [0, 0, 1, 1], [], []>} : vector<16x10xf32>, vector<10x384xf32>, vector<16x384xf32> -> vector<16x384xf32>
    %17 = arith.addf %12, %16 : vector<16x384xf32>
    %c2 = arith.constant 2 : index
    %c0_9 = arith.constant 0 : index
    %c0_10 = arith.constant 0 : index
    %18 = vector.load %arg3[%c2, %c0_9, %c0_10] : memref<9x16x10xf32, #tpu.memory_space<vmem>>, vector<1x16x10xf32>
    %19 = vector.shape_cast %18 : vector<1x16x10xf32> to vector<16x10xf32>
    %20 = vector.extract_strided_slice %6 {offsets = [0, 2], sizes = [10, 384], strides = [1, 1]} : vector<10x422xf32> to vector<10x384xf32>
    %cst_11 = arith.constant dense<0.000000e+00> : vector<16x384xf32>
    %21 = tpu.matmul %19, %20, %cst_11 {dimension_numbers = #tpu.dot_dimension_numbers<[1], [0], [0], [1], [0, 0, 1, 1], [], []>} : vector<16x10xf32>, vector<10x384xf32>, vector<16x384xf32> -> vector<16x384xf32>
    %22 = arith.addf %17, %21 : vector<16x384xf32>
    %c3 = arith.constant 3 : index
    %c0_12 = arith.constant 0 : index
    %c0_13 = arith.constant 0 : index
    %23 = vector.load %arg3[%c3, %c0_12, %c0_13] : memref<9x16x10xf32, #tpu.memory_space<vmem>>, vector<1x16x10xf32>
    %24 = vector.shape_cast %23 : vector<1x16x10xf32> to vector<16x10xf32>
    %25 = vector.extract_strided_slice %6 {offsets = [0, 18], sizes = [10, 384], strides = [1, 1]} : vector<10x422xf32> to vector<10x384xf32>
    %cst_14 = arith.constant dense<0.000000e+00> : vector<16x384xf32>
    %26 = tpu.matmul %24, %25, %cst_14 {dimension_numbers = #tpu.dot_dimension_numbers<[1], [0], [0], [1], [0, 0, 1, 1], [], []>} : vector<16x10xf32>, vector<10x384xf32>, vector<16x384xf32> -> vector<16x384xf32>
    %27 = arith.addf %22, %26 : vector<16x384xf32>
    %c4 = arith.constant 4 : index
    %c0_15 = arith.constant 0 : index
    %c0_16 = arith.constant 0 : index
    %28 = vector.load %arg3[%c4, %c0_15, %c0_16] : memref<9x16x10xf32, #tpu.memory_space<vmem>>, vector<1x16x10xf32>
    %29 = vector.shape_cast %28 : vector<1x16x10xf32> to vector<16x10xf32>
    %30 = vector.extract_strided_slice %6 {offsets = [0, 19], sizes = [10, 384], strides = [1, 1]} : vector<10x422xf32> to vector<10x384xf32>
    %cst_17 = arith.constant dense<0.000000e+00> : vector<16x384xf32>
    %31 = tpu.matmul %29, %30, %cst_17 {dimension_numbers = #tpu.dot_dimension_numbers<[1], [0], [0], [1], [0, 0, 1, 1], [], []>} : vector<16x10xf32>, vector<10x384xf32>, vector<16x384xf32> -> vector<16x384xf32>
    %32 = arith.addf %27, %31 : vector<16x384xf32>
    %c5 = arith.constant 5 : index
    %c0_18 = arith.constant 0 : index
    %c0_19 = arith.constant 0 : index
    %33 = vector.load %arg3[%c5, %c0_18, %c0_19] : memref<9x16x10xf32, #tpu.memory_space<vmem>>, vector<1x16x10xf32>
    %34 = vector.shape_cast %33 : vector<1x16x10xf32> to vector<16x10xf32>
    %35 = vector.extract_strided_slice %6 {offsets = [0, 20], sizes = [10, 384], strides = [1, 1]} : vector<10x422xf32> to vector<10x384xf32>
    %cst_20 = arith.constant dense<0.000000e+00> : vector<16x384xf32>
    %36 = tpu.matmul %34, %35, %cst_20 {dimension_numbers = #tpu.dot_dimension_numbers<[1], [0], [0], [1], [0, 0, 1, 1], [], []>} : vector<16x10xf32>, vector<10x384xf32>, vector<16x384xf32> -> vector<16x384xf32>
    %37 = arith.addf %32, %36 : vector<16x384xf32>
    %c6 = arith.constant 6 : index
    %c0_21 = arith.constant 0 : index
    %c0_22 = arith.constant 0 : index
    %38 = vector.load %arg3[%c6, %c0_21, %c0_22] : memref<9x16x10xf32, #tpu.memory_space<vmem>>, vector<1x16x10xf32>
    %39 = vector.shape_cast %38 : vector<1x16x10xf32> to vector<16x10xf32>
    %40 = vector.extract_strided_slice %6 {offsets = [0, 36], sizes = [10, 384], strides = [1, 1]} : vector<10x422xf32> to vector<10x384xf32>
    %cst_23 = arith.constant dense<0.000000e+00> : vector<16x384xf32>
    %41 = tpu.matmul %39, %40, %cst_23 {dimension_numbers = #tpu.dot_dimension_numbers<[1], [0], [0], [1], [0, 0, 1, 1], [], []>} : vector<16x10xf32>, vector<10x384xf32>, vector<16x384xf32> -> vector<16x384xf32>
    %42 = arith.addf %37, %41 : vector<16x384xf32>
    %c7 = arith.constant 7 : index
    %c0_24 = arith.constant 0 : index
    %c0_25 = arith.constant 0 : index
    %43 = vector.load %arg3[%c7, %c0_24, %c0_25] : memref<9x16x10xf32, #tpu.memory_space<vmem>>, vector<1x16x10xf32>
    %44 = vector.shape_cast %43 : vector<1x16x10xf32> to vector<16x10xf32>
    %45 = vector.extract_strided_slice %6 {offsets = [0, 37], sizes = [10, 384], strides = [1, 1]} : vector<10x422xf32> to vector<10x384xf32>
    %cst_26 = arith.constant dense<0.000000e+00> : vector<16x384xf32>
    %46 = tpu.matmul %44, %45, %cst_26 {dimension_numbers = #tpu.dot_dimension_numbers<[1], [0], [0], [1], [0, 0, 1, 1], [], []>} : vector<16x10xf32>, vector<10x384xf32>, vector<16x384xf32> -> vector<16x384xf32>
    %47 = arith.addf %42, %46 : vector<16x384xf32>
    %c8 = arith.constant 8 : index
    %c0_27 = arith.constant 0 : index
    %c0_28 = arith.constant 0 : index
    %48 = vector.load %arg3[%c8, %c0_27, %c0_28] : memref<9x16x10xf32, #tpu.memory_space<vmem>>, vector<1x16x10xf32>
    %49 = vector.shape_cast %48 : vector<1x16x10xf32> to vector<16x10xf32>
    %50 = vector.extract_strided_slice %6 {offsets = [0, 38], sizes = [10, 384], strides = [1, 1]} : vector<10x422xf32> to vector<10x384xf32>
    %cst_29 = arith.constant dense<0.000000e+00> : vector<16x384xf32>
    %51 = tpu.matmul %49, %50, %cst_29 {dimension_numbers = #tpu.dot_dimension_numbers<[1], [0], [0], [1], [0, 0, 1, 1], [], []>} : vector<16x10xf32>, vector<10x384xf32>, vector<16x384xf32> -> vector<16x384xf32>
    %52 = arith.addf %47, %51 : vector<16x384xf32>
    %c0_30 = arith.constant 0 : index
    %c0_31 = arith.constant 0 : index
    %53 = vector.load %arg4[%c0_30, %c0_31] : memref<16x1xf32, #tpu.memory_space<vmem>>, vector<16x1xf32>
    %54 = vector.broadcast %53 : vector<16x1xf32> to vector<16x384xf32>
    %55 = arith.addf %52, %54 : vector<16x384xf32>
    %cst_32 = arith.constant 5.000000e-01 : f32
    %56 = vector.broadcast %cst_32 : f32 to vector<16x384xf32>
    %57 = arith.mulf %56, %55 : vector<16x384xf32>
    %58 = math.tanh %57 : vector<16x384xf32>
    %cst_33 = arith.constant 5.000000e-01 : f32
    %59 = vector.broadcast %cst_33 : f32 to vector<16x384xf32>
    %60 = arith.mulf %59, %58 : vector<16x384xf32>
    %cst_34 = arith.constant 5.000000e-01 : f32
    %61 = vector.broadcast %cst_34 : f32 to vector<16x384xf32>
    %62 = arith.addf %61, %60 : vector<16x384xf32>
    %63 = vector.extract_strided_slice %62 {offsets = [0, 0], sizes = [12, 384], strides = [1, 1]} : vector<16x384xf32> to vector<12x384xf32>
    %c384_i32_35 = arith.constant 384 : i32
    %64 = arith.muli %c0_i32, %c384_i32_35 : i32
    %65 = tpu.assume_multiple %64, 128 : i32
    %c0_36 = arith.constant 0 : index
    %c0_37 = arith.constant 0 : index
    %66 = arith.index_cast %65 : i32 to index
    %67 = vector.load %arg5[%c0_36, %c0_37, %66] : memref<1x12x384xf32, #tpu.memory_space<vmem>>, vector<1x12x384xf32>
    %68 = vector.shape_cast %67 : vector<1x12x384xf32> to vector<12x384xf32>
    %69 = vector.shape_cast %63 : vector<12x384xf32> to vector<1x12x384xf32>
    tpu.vector_store %arg5[%c0_36, %c0_37, %66], %69 {strides = array<i32>} : memref<1x12x384xf32, #tpu.memory_space<vmem>>, vector<1x12x384xf32>,
    %c1_i32 = arith.constant 1 : i32
    return
  }
  func.func @transform_0(%arg0: i32, %arg1: i32) -> (i32, i32, i32) {
    %c0_i32 = arith.constant 0 : i32
    %c0_i32_0 = arith.constant 0 : i32
    %c0_i32_1 = arith.constant 0 : i32
    return %arg0, %c0_i32, %c0_i32_0 : i32, i32, i32
  }
  func.func @transform_1(%arg0: i32, %arg1: i32) -> (i32, i32, i32) {
    %c0_i32 = arith.constant 0 : i32
    %c0_i32_0 = arith.constant 0 : i32
    %c0_i32_1 = arith.constant 0 : i32
    %c0_i32_2 = arith.constant 0 : i32
    return %c0_i32, %c0_i32_0, %c0_i32_1 : i32, i32, i32
  }
  func.func @transform_2(%arg0: i32, %arg1: i32) -> (i32, i32) {
    %c0_i32 = arith.constant 0 : i32
    %c0_i32_0 = arith.constant 0 : i32
    %c0_i32_1 = arith.constant 0 : i32
    return %c0_i32, %c0_i32_0 : i32, i32
  }
  func.func @transform_3(%arg0: i32, %arg1: i32) -> (i32, i32, i32) {
    %c0_i32 = arith.constant 0 : i32
    %c0_i32_0 = arith.constant 0 : i32
    return %arg0, %c0_i32, %arg1 : i32, i32, i32
  }
}

</mosaic_0001>

<llo_original>
// kernel: simple_enhancer_forward.1
$region0: #{simple_enhancer_forward.1}
  #allocation0 [shape = 'u32[]', space=smem, size = 0x4, offset = 0x4, fixed_abs, tag = 'smem constant byte address 0x4 - core index']
  #allocation1 [shape = 'u32[144,128]{1,0:T(1,128)}', space=vmem, size = 0x12000, scoped, tag = 'internal scratch']
  %s0 = inlined_call_operand.vmem [shape: f32[2,10,432], index: 0, kind: input, shape index: {}]
  %s1 = inlined_call_operand.vmem [shape: f32[9,16,10], index: 1, kind: input, shape index: {}]
  %s2 = inlined_call_operand.vmem [shape: f32[16,1], index: 2, kind: input, shape index: {}]
  %s3 = inlined_call_operand.vmem [shape: f32[2,12,384], index: 3, kind: output, shape index: {}]
  %s4 = sld [smem:[#allocation0]]
  $region45: #{simple_enhancer_forward.1} parent=0
    _
  %s6 = ssub.s32 1, %s4
  %s7 = scalar_select 0, %s6, %s4
  loop: start=0, step=1, limit=4
  $region2: #{simple_enhancer_forward.1} parent=0 // loop_pre_header
    _
  $region3: #{simple_enhancer_forward.1} parent=0 // loop_header
    %s9 = sphi 0, %s13
    %p10 = scmp.ge.s32.totalorder %s9, 4
    %s16 = sphi 0, %s28
    %s17 = sphi 0, %s24
    %s18 = sphi 0, %s16
    %s19 = sphi 0, %s17
    %s20 = sphi 0, %s18
    %s21 = sphi 0, %s19
    %s31 = sphi 0, %s33
    %s34 = sphi 0, %s31
    %s35 = sphi 0, %s34
    %s51 = sphi 0, %s35
    %s55 = sphi 0, %s55
    %s57 = sphi 0, %s55
    %s58 = sphi 0, %s57
    %s72 = sphi 0, %s58
    %s76 = sphi 0, %s76
    %s78 = sphi 0, %s76
    %s79 = sphi 0, %s78
    %s93 = sphi 0, %s79
    %s101 = sphi 0, %s103
    %s104 = sphi 0, %s101
    %s105 = sphi 0, %s104
    %s121 = sphi 0, %s105
  $region4: #{simple_enhancer_forward.1} parent=0 // loop_header_branch
    %12 = sbr.rel (%p10) target = $region8
  $region5: #{simple_enhancer_forward.1} parent=0 // loop_body
    %s14 = ssub.s32 %s9, 1
    %s15 = ssub.s32 %s9, 2
    %s22 = sadd.s32 1, %s17
    %p23 = scmp.ge.s32.totalorder %s22, 1
    %s24 = scalar_select %p23, 0, %s22
    %s25 = sadd.s32 1, %s16
    %s26 = scalar_select %p23, %s25, %s16
    %p27 = scmp.ge.s32.totalorder %s26, 2
    %s28 = scalar_select %p27, 0, %s26
    %s29 = ssub.s32 %s16, %s28
    %p30 = scmp.eq.s32.totalorder %s29, 0
    %s32 = sadd.s32 %s31, 1
    %s33 = scalar_select %p30, %s31, %s32
    %p36 = pneg %p30
    %p37 = scmp.eq.s32.totalorder %s9, 1
    %p38 = por %p36, %p37
    %p39 = scmp.ne.s32.totalorder %s31, %s34
    %p40 = scmp.eq.s32.totalorder %s9, 0
    %p41 = por %p39, %p40
    %p42 = scmp.ne.s32.totalorder %s31, %s34
    %p43 = scmp.eq.s32.totalorder %s14, 1
    %p44 = por %p42, %p43
    %p45 = scmp.ne.s32.totalorder %s34, %s35
    %p46 = scmp.eq.s32.totalorder %s14, 0
    %p47 = por %p45, %p46
    %p48 = scmp.ne.s32.totalorder %s34, %s35
    %p49 = scmp.eq.s32.totalorder %s15, 1
    %p50 = por %p48, %p49
    %p52 = scmp.ne.s32.totalorder %s35, %s51
    %p53 = scmp.eq.s32.totalorder %s15, 0
    %p54 = por %p52, %p53
    %s56 = sadd.s32 %s55, 1
    %p59 = scmp.eq.s32.totalorder %s9, 1
    %p60 = scmp.ne.s32.totalorder %s55, %s57
    %p61 = scmp.eq.s32.totalorder %s9, 0
    %p62 = por %p60, %p61
    %p63 = scmp.ne.s32.totalorder %s55, %s57
    %p64 = scmp.eq.s32.totalorder %s14, 1
    %p65 = por %p63, %p64
    %p66 = scmp.ne.s32.totalorder %s57, %s58
    %p67 = scmp.eq.s32.totalorder %s14, 0
    %p68 = por %p66, %p67
    %p69 = scmp.ne.s32.totalorder %s57, %s58
    %p70 = scmp.eq.s32.totalorder %s15, 1
    %p71 = por %p69, %p70
    %p73 = scmp.ne.s32.totalorder %s58, %s72
    %p74 = scmp.eq.s32.totalorder %s15, 0
    %p75 = por %p73, %p74
    %s77 = sadd.s32 %s76, 1
    %p80 = scmp.eq.s32.totalorder %s9, 1
    %p81 = scmp.ne.s32.totalorder %s76, %s78
    %p82 = scmp.eq.s32.totalorder %s9, 0
    %p83 = por %p81, %p82
    %p84 = scmp.ne.s32.totalorder %s76, %s78
    %p85 = scmp.eq.s32.totalorder %s14, 1
    %p86 = por %p84, %p85
    %p87 = scmp.ne.s32.totalorder %s78, %s79
    %p88 = scmp.eq.s32.totalorder %s14, 0
    %p89 = por %p87, %p88
    %p90 = scmp.ne.s32.totalorder %s78, %s79
    %p91 = scmp.eq.s32.totalorder %s15, 1
    %p92 = por %p90, %p91
    %p94 = scmp.ne.s32.totalorder %s79, %s93
    %p95 = scmp.eq.s32.totalorder %s15, 0
    %p96 = por %p94, %p95
    %s97 = ssub.s32 %s16, %s28
    %s98 = ssub.s32 %s17, %s24
    %s99 = sor.u32 %s97, %s98
    %p100 = scmp.eq.s32.totalorder %s99, 0
    %s102 = sadd.s32 %s101, 1
    %s103 = scalar_select %p100, %s101, %s102
    %p106 = pneg %p100
    %p107 = scmp.eq.s32.totalorder %s9, 1
    %p108 = por %p106, %p107
    %p109 = scmp.ne.s32.totalorder %s101, %s104
    %p110 = scmp.eq.s32.totalorder %s9, 0
    %p111 = por %p109, %p110
    %p112 = scmp.ne.s32.totalorder %s101, %s104
    %p113 = scmp.eq.s32.totalorder %s14, 1
    %p114 = por %p112, %p113
    %p115 = scmp.ne.s32.totalorder %s104, %s105
    %p116 = scmp.eq.s32.totalorder %s14, 0
    %p117 = por %p115, %p116
    %p118 = scmp.ne.s32.totalorder %s104, %s105
    %p119 = scmp.eq.s32.totalorder %s15, 1
    %p120 = por %p118, %p119
    %p122 = scmp.ne.s32.totalorder %s105, %s121
    %p123 = scmp.eq.s32.totalorder %s15, 0
    %p124 = por %p122, %p123
    %p125 = scmp.le.s32.totalorder 1, %s9
    %p126 = scmp.lt.s32.totalorder %s9, 3
    %p127 = pnand %p125, %p126
    %p128 = pneg %p127
    // Predicated region
    $region9: #{simple_enhancer_forward.1} parent=5 // pred_check
      _
    $region10: #{simple_enhancer_forward.1} parent=5 // pred_check_branch
      %130 = sbr.rel (%p127) target = $region12
    $region11: #{simple_enhancer_forward.1} parent=5 // pred_region
      %s131 = ssub.s32 %s9, 1
      // Predicated region
      $region13: #{simple_enhancer_forward.1} parent=11 // pred_check
        %p132 = pneg %p68
      $region14: #{simple_enhancer_forward.1} parent=11 // pred_check_branch
        %134 = sbr.rel (%p132) target = $region16
      $region15: #{simple_enhancer_forward.1} parent=11 // pred_region
        _
      $region16: #{simple_enhancer_forward.1} parent=11 // pred_fallthru
        _
      // Predicated region
      $region17: #{simple_enhancer_forward.1} parent=11 // pred_check
        %p135 = pneg %p89
      $region18: #{simple_enhancer_forward.1} parent=11 // pred_check_branch
        %137 = sbr.rel (%p135) target = $region20
      $region19: #{simple_enhancer_forward.1} parent=11 // pred_region
        _
      $region20: #{simple_enhancer_forward.1} parent=11 // pred_fallthru
        _
    $region12: #{simple_enhancer_forward.1} parent=5 // pred_fallthru
      _
    %p138 = scmp.lt.s32.totalorder %s9, 2
    // Predicated region
    $region21: #{simple_enhancer_forward.1} parent=5 // pred_check
      %p139 = pneg %p138
    $region22: #{simple_enhancer_forward.1} parent=5 // pred_check_branch
      %141 = sbr.rel (%p139) target = $region24
    $region23: #{simple_enhancer_forward.1} parent=5 // pred_region
      // Predicated region
      $region25: #{simple_enhancer_forward.1} parent=23 // pred_check
        %p142 = pneg %p41
      $region26: #{simple_enhancer_forward.1} parent=23 // pred_check_branch
        %144 = sbr.rel (%p142) target = $region28
      $region27: #{simple_enhancer_forward.1} parent=23 // pred_region
        %p145 = scmp.lt.s32.totalorder %s16, 1
        %s146 = scalar_select %p145, %s16, 1
        %s147 = smul.addr %s146, 8
        %s148 = smul.addr %s147, 8
        %s149 = scalar_lea.vmem %s0, %s148
      $region28: #{simple_enhancer_forward.1} parent=23 // pred_fallthru
        _
    $region24: #{simple_enhancer_forward.1} parent=5 // pred_fallthru
      _
    %p150 = scmp.le.s32.totalorder 1, %s9
    %p151 = scmp.lt.s32.totalorder %s9, 3
    %p152 = pnand %p150, %p151
    %p153 = pneg %p152
    // Predicated region
    $region29: #{simple_enhancer_forward.1} parent=5 // pred_check
      _
    $region30: #{simple_enhancer_forward.1} parent=5 // pred_check_branch
      %155 = sbr.rel (%p152) target = $region32
    $region31: #{simple_enhancer_forward.1} parent=5 // pred_region
      %s156 = ssub.s32 %s9, 1
      %p157 = scmp.lt.s32.totalorder %s18, 1
      %s158 = scalar_select %p157, %s18, 1
      %s159 = smul.addr %s158, 8
      %s160 = smul.addr %s159, 8
      %s161 = scalar_lea.vmem %s0, %s160
      %p162 = pneg %p47
      %p163 = pneg %p44
      %p164 = pneg %p68
      %p165 = pneg %p65
      %p166 = pneg %p89
      %p167 = pneg %p86
      %p168 = pneg %p117
      %p169 = pneg %p114
      %s170 = smul.u32 3, %s19
      %p171 = scmp.lt.s32.totalorder %s18, 1
      %s172 = scalar_select %p171, %s18, 1
      %p173 = scmp.lt.s32.totalorder %s170, 2
      %s174 = scalar_select %p173, %s170, 2
      %s175 = smul.addr %s172, 6
      %s176 = sadd.s32 %s174, %s175
      %s177 = smul.addr %s176, 8
      %s178 = scalar_lea.vmem %s3, %s177
      %p179 = scmp.lt.s32.totalorder %s18, 1
      %s180 = scalar_select %p179, %s18, 1
      %s181 = smul.addr %s180, 8
      %s182 = smul.addr %s181, 8
      %s183 = scalar_lea.vmem %s0, %s182
      %s184 = smul.u32 3, %s19
      %p185 = scmp.lt.s32.totalorder %s18, 1
      %s186 = scalar_select %p185, %s18, 1
      %p187 = scmp.lt.s32.totalorder %s184, 2
      %s188 = scalar_select %p187, %s184, 2
      %s189 = smul.addr %s186, 6
      %s190 = sadd.s32 %s188, %s189
      %s191 = smul.addr %s190, 8
      %s192 = scalar_lea.vmem %s3, %s191
      %s193 = smul.u32 3, %s19
      %s194 = smul.u32 %s19, 384
      %s195 = sshra.s32 %s194, 7
      %s196 = sand.u32 %s194, 127
      %s197 = smul.addr %s195, 8
      %s198 = scalar_lea.vmem %s183, %s197
      %v199 = vld [vmem:[%s198] sm:$0xff]
      %v200 = vld [vmem:[%s198 + $0x8] sm:$0xff]
      %v201 = vld [vmem:[%s198 + $0x10] sm:$0xff]
      %v202 = vld [vmem:[%s198 + $0x18] sm:$0xff]
      %v203 = vld [vmem:[%s198 + $0x20] sm:$0x3]
      %v204 = vld [vmem:[%s198 + $0x28] sm:$0x3]
      %v205 = vld [vmem:[%s198 + $0x30] sm:$0x3]
      %v206 = vld [vmem:[%s198 + $0x38] sm:$0x3]
      %v207 = vld [vmem:[%s1] sm:$0xff]
      %v208 = vld [vmem:[%s1 + $0x8] sm:$0xff]
      %s209 = scalar_lea.vmem %s1, 16
      %v210 = vld [vmem:[%s209] sm:$0xff]
      %v211 = vld [vmem:[%s209 + $0x8] sm:$0xff]
      %220 = vrot.lane.b32.xlu0 %v199, 127
      %v221 = vpop.permute.xlu0 %220
      %222 = vrot.lane.b32.xlu0 %v200, 127
      %v223 = vpop.permute.xlu0 %222
      %224 = vrot.lane.b32.xlu0 %v201, 127
      %v225 = vpop.permute.xlu0 %224
      %226 = vrot.lane.b32.xlu0 %v202, 127
      %v227 = vpop.permute.xlu0 %226
      %228 = vrot.lane.b32.xlu0 %v203, 127
      %v229 = vpop.permute.xlu0 %228
      %230 = vrot.lane.b32.xlu0 %v204, 127
      %v231 = vpop.permute.xlu0 %230
      %232 = vrot.lane.b32.xlu0 %v205, 127
      %v233 = vpop.permute.xlu0 %232
      %234 = vrot.lane.b32.xlu0 %v206, 127
      %v235 = vpop.permute.xlu0 %234
      %vm236 = vcmask 1039360
      %v237 = vsel %vm236, %v221, %v223
      %v238 = vsel %vm236, %v223, %v225
      %v239 = vsel %vm236, %v225, %v227
      %v240 = vsel %vm236, %v229, %v231
      %v241 = vsel %vm236, %v231, %v233
      %v242 = vsel %vm236, %v233, %v235
      %vm246 = vcmask 80896
      %v248 = vsel %vm246, %v210, 0
      %v251 = vsel %vm246, %v211, 0
      %vm253 = vcmask 1041408
      %v254 = vsel %vm253, %v240, 0
      %v256 = vsel %vm253, %v241, 0
      %v258 = vsel %vm253, %v242, 0
      %260 = vmatprep.subr.mxu0 %v238
      %261 = vmatpush1.msra.mxu0 %v237
      %262 = vmatprep.subr.mxu0 %v256
      %263 = vmatpush1.msra.mxu0 %v254
      %264 = vmatprep.subr.mxu0 0.0
      %265 = vmatpush1.msra.mxu0 0.0
      %266 = vmatprep.subr.mxu0 0.0
      %267 = vmatpush1.msra.mxu0 0.0
      %268 = vmatprep.subr.mxu0 0.0
      %269 = vmatpush1.msra.mxu0 0.0
      %270 = vmatprep.subr.mxu0 0.0
      %271 = vmatpush1.msra.mxu0 0.0
      %272 = vmatprep.subr.mxu0 0.0
      %273 = vmatpush1.msra.mxu0 0.0
      %274 = vmatprep.subr.mxu0 0.0
      %275 = vmatpush1.msra.mxu0 0.0
      %276 = vmatprep.subr.mxu0 0.0
      %277 = vmatpush1.msra.mxu0 0.0
      %278 = vmatprep.subr.mxu0 0.0
      %279 = vmatpush1.msra.mxu0 0.0
      %280 = vmatprep.subr.mxu0 0.0
      %281 = vmatpush1.msra.mxu0 0.0
      %282 = vmatprep.subr.mxu0 0.0
      %283 = vmatpush1.msra.mxu0 0.0
      %284 = vmatprep.subr.mxu0 0.0
      %285 = vmatpush1.msra.mxu0 0.0
      %286 = vmatprep.subr.mxu0 0.0
      %287 = vmatpush1.msra.mxu0 0.0
      %288 = vmatprep.subr.mxu0 0.0
      %289 = vmatpush1.msra.mxu0 0.0
      %290 = vmatprep.subr.mxu0 0.0
      %291 = vmatpush1.msra.mxu0 0.0
      %292 = vmatprep.subr.mxu0 0.0
      %293 = vmatpush1.msra.mxu0 0.0
      %294 = vmatprep.subr.mxu0 0.0
      %295 = vmatpush1.msra.mxu0 0.0
      %296 = vmatprep.subr.mxu0 0.0
      %297 = vmatpush1.msra.mxu0 0.0
      %298 = vmatprep.subr.mxu0 0.0
      %299 = vmatpush1.msra.mxu0 0.0
      %300 = vmatprep.subr.mxu0 0.0
      %301 = vmatpush1.msra.mxu0 0.0
      %302 = vmatprep.subr.mxu0 0.0
      %303 = vmatpush1.msra.mxu0 0.0
      %304 = vmatprep.subr.mxu0 0.0
      %305 = vmatpush1.msra.mxu0 0.0
      %306 = vmatprep.subr.mxu0 0.0
      %307 = vmatpush1.msra.mxu0 0.0
      %308 = vmatprep.subr.mxu0 0.0
      %309 = vmatpush1.msra.mxu0 0.0
      %310 = vmatprep.subr.mxu0 0.0
      %311 = vmatpush1.msra.mxu0 0.0
      %312 = vmatprep.subr.mxu0 0.0
      %313 = vmatpush1.msra.mxu0 0.0
      %314 = vmatprep.subr.mxu0 0.0
      %315 = vmatpush1.msra.mxu0 0.0
      %316 = vmatprep.subr.mxu0 0.0
      %317 = vmatpush1.msra.mxu0 0.0
      %318 = vmatprep.subr.mxu0 0.0
      %319 = vmatpush1.msra.mxu0 0.0
      %320 = vmatprep.subr.mxu0 0.0
      %321 = vmatpush1.msra.mxu0 0.0
      %322 = vmatprep.subr.mxu0 0.0
      %323 = vmatpush1.msra.mxu0 0.0
      %324 = vmatprep.mubr.f32.mxu0 0.0
      %325 = vmatmul.mubr.f32.gmra.mrb[0].mxu0 %v248
      %v326 = vpop.f32.mrb[0].mxu0
      %v327 = vadd.f32 0.0, %v326
      %v328 = vpop.f32.mrb[0].mxu0
      %v329 = vadd.f32 0.0, %v328
      %330 = vmatprep.mubr.f32.mxu0 0.0
      %331 = vmatmul.mubr.f32.gmra.mrb[0].mxu0 %v251
      %v332 = vpop.f32.mrb[0].mxu0
      %v333 = vadd.f32 0.0, %v332
      %v334 = vpop.f32.mrb[0].mxu0
      %v335 = vadd.f32 0.0, %v334
      %336 = vdwg.mxu0
      %337 = vmatprep.subr.mxu0 0.0
      %338 = vmatpush1.msra.mxu0 %v239
      %339 = vmatprep.subr.mxu0 0.0
      %340 = vmatpush1.msra.mxu0 %v258
      %341 = vmatprep.subr.mxu0 0.0
      %342 = vmatpush1.msra.mxu0 0.0
      %343 = vmatprep.subr.mxu0 0.0
      %344 = vmatpush1.msra.mxu0 0.0
      %345 = vmatprep.subr.mxu0 0.0
      %346 = vmatpush1.msra.mxu0 0.0
      %347 = vmatprep.subr.mxu0 0.0
      %348 = vmatpush1.msra.mxu0 0.0
      %349 = vmatprep.subr.mxu0 0.0
      %350 = vmatpush1.msra.mxu0 0.0
      %351 = vmatprep.subr.mxu0 0.0
      %352 = vmatpush1.msra.mxu0 0.0
      %353 = vmatprep.subr.mxu0 0.0
      %354 = vmatpush1.msra.mxu0 0.0
      %355 = vmatprep.subr.mxu0 0.0
      %356 = vmatpush1.msra.mxu0 0.0
      %357 = vmatprep.subr.mxu0 0.0
      %358 = vmatpush1.msra.mxu0 0.0
      %359 = vmatprep.subr.mxu0 0.0
      %360 = vmatpush1.msra.mxu0 0.0
      %361 = vmatprep.subr.mxu0 0.0
      %362 = vmatpush1.msra.mxu0 0.0
      %363 = vmatprep.subr.mxu0 0.0
      %364 = vmatpush1.msra.mxu0 0.0
      %365 = vmatprep.subr.mxu0 0.0
      %366 = vmatpush1.msra.mxu0 0.0
      %367 = vmatprep.subr.mxu0 0.0
      %368 = vmatpush1.msra.mxu0 0.0
      %369 = vmatprep.subr.mxu0 0.0
      %370 = vmatpush1.msra.mxu0 0.0
      %371 = vmatprep.subr.mxu0 0.0
      %372 = vmatpush1.msra.mxu0 0.0
      %373 = vmatprep.subr.mxu0 0.0
      %374 = vmatpush1.msra.mxu0 0.0
      %375 = vmatprep.subr.mxu0 0.0
      %376 = vmatpush1.msra.mxu0 0.0
      %377 = vmatprep.subr.mxu0 0.0
      %378 = vmatpush1.msra.mxu0 0.0
      %379 = vmatprep.subr.mxu0 0.0
      %380 = vmatpush1.msra.mxu0 0.0
      %381 = vmatprep.subr.mxu0 0.0
      %382 = vmatpush1.msra.mxu0 0.0
      %383 = vmatprep.subr.mxu0 0.0
      %384 = vmatpush1.msra.mxu0 0.0
      %385 = vmatprep.subr.mxu0 0.0
      %386 = vmatpush1.msra.mxu0 0.0
      %387 = vmatprep.subr.mxu0 0.0
      %388 = vmatpush1.msra.mxu0 0.0
      %389 = vmatprep.subr.mxu0 0.0
      %390 = vmatpush1.msra.mxu0 0.0
      %391 = vmatprep.subr.mxu0 0.0
      %392 = vmatpush1.msra.mxu0 0.0
      %393 = vmatprep.subr.mxu0 0.0
      %394 = vmatpush1.msra.mxu0 0.0
      %395 = vmatprep.subr.mxu0 0.0
      %396 = vmatpush1.msra.mxu0 0.0
      %397 = vmatprep.subr.mxu0 0.0
      %398 = vmatpush1.msra.mxu0 0.0
      %399 = vmatprep.subr.mxu0 0.0
      %400 = vmatpush1.msra.mxu0 0.0
      %401 = vmatprep.mubr.f32.mxu0 0.0
      %402 = vmatmul.mubr.f32.gmra.mrb[0].mxu0 %v248
      %v403 = vpop.f32.mrb[0].mxu0
      %v404 = vadd.f32 0.0, %v403
      %v405 = vpop.f32.mrb[0].mxu0
      %406 = vmatprep.mubr.f32.mxu0 0.0
      %407 = vmatmul.mubr.f32.gmra.mrb[0].mxu0 %v251
      %v408 = vpop.f32.mrb[0].mxu0
      %v409 = vadd.f32 0.0, %v408
      %v410 = vpop.f32.mrb[0].mxu0
      %411 = vdwg.mxu0
      %v413 = vsel %vm246, %v207, 0
      %v416 = vsel %vm246, %v208, 0
      %v418 = vsel %vm253, %v203, 0
      %v420 = vsel %vm253, %v204, 0
      %v422 = vsel %vm253, %v205, 0
      %424 = vmatprep.subr.mxu0 %v200
      %425 = vmatpush1.msra.mxu0 %v199
      %426 = vmatprep.subr.mxu0 %v420
      %427 = vmatpush1.msra.mxu0 %v418
      %428 = vmatprep.subr.mxu0 0.0
      %429 = vmatpush1.msra.mxu0 0.0
      %430 = vmatprep.subr.mxu0 0.0
      %431 = vmatpush1.msra.mxu0 0.0
      %432 = vmatprep.subr.mxu0 0.0
      %433 = vmatpush1.msra.mxu0 0.0
      %434 = vmatprep.subr.mxu0 0.0
      %435 = vmatpush1.msra.mxu0 0.0
      %436 = vmatprep.subr.mxu0 0.0
      %437 = vmatpush1.msra.mxu0 0.0
      %438 = vmatprep.subr.mxu0 0.0
      %439 = vmatpush1.msra.mxu0 0.0
      %440 = vmatprep.subr.mxu0 0.0
      %441 = vmatpush1.msra.mxu0 0.0
      %442 = vmatprep.subr.mxu0 0.0
      %443 = vmatpush1.msra.mxu0 0.0
      %444 = vmatprep.subr.mxu0 0.0
      %445 = vmatpush1.msra.mxu0 0.0
      %446 = vmatprep.subr.mxu0 0.0
      %447 = vmatpush1.msra.mxu0 0.0
      %448 = vmatprep.subr.mxu0 0.0
      %449 = vmatpush1.msra.mxu0 0.0
      %450 = vmatprep.subr.mxu0 0.0
      %451 = vmatpush1.msra.mxu0 0.0
      %452 = vmatprep.subr.mxu0 0.0
      %453 = vmatpush1.msra.mxu0 0.0
      %454 = vmatprep.subr.mxu0 0.0
      %455 = vmatpush1.msra.mxu0 0.0
      %456 = vmatprep.subr.mxu0 0.0
      %457 = vmatpush1.msra.mxu0 0.0
      %458 = vmatprep.subr.mxu0 0.0
      %459 = vmatpush1.msra.mxu0 0.0
      %460 = vmatprep.subr.mxu0 0.0
      %461 = vmatpush1.msra.mxu0 0.0
      %462 = vmatprep.subr.mxu0 0.0
      %463 = vmatpush1.msra.mxu0 0.0
      %464 = vmatprep.subr.mxu0 0.0
      %465 = vmatpush1.msra.mxu0 0.0
      %466 = vmatprep.subr.mxu0 0.0
      %467 = vmatpush1.msra.mxu0 0.0
      %468 = vmatprep.subr.mxu0 0.0
      %469 = vmatpush1.msra.mxu0 0.0
      %470 = vmatprep.subr.mxu0 0.0
      %471 = vmatpush1.msra.mxu0 0.0
      %472 = vmatprep.subr.mxu0 0.0
      %473 = vmatpush1.msra.mxu0 0.0
      %474 = vmatprep.subr.mxu0 0.0
      %475 = vmatpush1.msra.mxu0 0.0
      %476 = vmatprep.subr.mxu0 0.0
      %477 = vmatpush1.msra.mxu0 0.0
      %478 = vmatprep.subr.mxu0 0.0
      %479 = vmatpush1.msra.mxu0 0.0
      %480 = vmatprep.subr.mxu0 0.0
      %481 = vmatpush1.msra.mxu0 0.0
      %482 = vmatprep.subr.mxu0 0.0
      %483 = vmatpush1.msra.mxu0 0.0
      %484 = vmatprep.subr.mxu0 0.0
      %485 = vmatpush1.msra.mxu0 0.0
      %486 = vmatprep.subr.mxu0 0.0
      %487 = vmatpush1.msra.mxu0 0.0
      %488 = vmatprep.mubr.f32.mxu0 0.0
      %489 = vmatmul.mubr.f32.gmra.mrb[0].mxu0 %v413
      %v490 = vpop.f32.mrb[0].mxu0
      %v491 = vadd.f32 %v327, %v490
      %v492 = vpop.f32.mrb[0].mxu0
      %v493 = vadd.f32 %v329, %v492
      %494 = vmatprep.mubr.f32.mxu0 0.0
      %495 = vmatmul.mubr.f32.gmra.mrb[0].mxu0 %v416
      %v496 = vpop.f32.mrb[0].mxu0
      %v497 = vadd.f32 %v333, %v496
      %v498 = vpop.f32.mrb[0].mxu0
      %v499 = vadd.f32 %v335, %v498
      %500 = vdwg.mxu0
      %501 = vmatprep.subr.mxu0 0.0
      %502 = vmatpush1.msra.mxu0 %v201
      %503 = vmatprep.subr.mxu0 0.0
      %504 = vmatpush1.msra.mxu0 %v422
      %505 = vmatprep.subr.mxu0 0.0
      %506 = vmatpush1.msra.mxu0 0.0
      %507 = vmatprep.subr.mxu0 0.0
      %508 = vmatpush1.msra.mxu0 0.0
      %509 = vmatprep.subr.mxu0 0.0
      %510 = vmatpush1.msra.mxu0 0.0
      %511 = vmatprep.subr.mxu0 0.0
      %512 = vmatpush1.msra.mxu0 0.0
      %513 = vmatprep.subr.mxu0 0.0
      %514 = vmatpush1.msra.mxu0 0.0
      %515 = vmatprep.subr.mxu0 0.0
      %516 = vmatpush1.msra.mxu0 0.0
      %517 = vmatprep.subr.mxu0 0.0
      %518 = vmatpush1.msra.mxu0 0.0
      %519 = vmatprep.subr.mxu0 0.0
      %520 = vmatpush1.msra.mxu0 0.0
      %521 = vmatprep.subr.mxu0 0.0
      %522 = vmatpush1.msra.mxu0 0.0
      %523 = vmatprep.subr.mxu0 0.0
      %524 = vmatpush1.msra.mxu0 0.0
      %525 = vmatprep.subr.mxu0 0.0
      %526 = vmatpush1.msra.mxu0 0.0
      %527 = vmatprep.subr.mxu0 0.0
      %528 = vmatpush1.msra.mxu0 0.0
      %529 = vmatprep.subr.mxu0 0.0
      %530 = vmatpush1.msra.mxu0 0.0
      %531 = vmatprep.subr.mxu0 0.0
      %532 = vmatpush1.msra.mxu0 0.0
      %533 = vmatprep.subr.mxu0 0.0
      %534 = vmatpush1.msra.mxu0 0.0
      %535 = vmatprep.subr.mxu0 0.0
      %536 = vmatpush1.msra.mxu0 0.0
      %537 = vmatprep.subr.mxu0 0.0
      %538 = vmatpush1.msra.mxu0 0.0
      %539 = vmatprep.subr.mxu0 0.0
      %540 = vmatpush1.msra.mxu0 0.0
      %541 = vmatprep.subr.mxu0 0.0
      %542 = vmatpush1.msra.mxu0 0.0
      %543 = vmatprep.subr.mxu0 0.0
      %544 = vmatpush1.msra.mxu0 0.0
      %545 = vmatprep.subr.mxu0 0.0
      %546 = vmatpush1.msra.mxu0 0.0
      %547 = vmatprep.subr.mxu0 0.0
      %548 = vmatpush1.msra.mxu0 0.0
      %549 = vmatprep.subr.mxu0 0.0
      %550 = vmatpush1.msra.mxu0 0.0
      %551 = vmatprep.subr.mxu0 0.0
      %552 = vmatpush1.msra.mxu0 0.0
      %553 = vmatprep.subr.mxu0 0.0
      %554 = vmatpush1.msra.mxu0 0.0
      %555 = vmatprep.subr.mxu0 0.0
      %556 = vmatpush1.msra.mxu0 0.0
      %557 = vmatprep.subr.mxu0 0.0
      %558 = vmatpush1.msra.mxu0 0.0
      %559 = vmatprep.subr.mxu0 0.0
      %560 = vmatpush1.msra.mxu0 0.0
      %561 = vmatprep.subr.mxu0 0.0
      %562 = vmatpush1.msra.mxu0 0.0
      %563 = vmatprep.subr.mxu0 0.0
      %564 = vmatpush1.msra.mxu0 0.0
      %565 = vmatprep.mubr.f32.mxu0 0.0
      %566 = vmatmul.mubr.f32.gmra.mrb[0].mxu0 %v413
      %v567 = vpop.f32.mrb[0].mxu0
      %v568 = vadd.f32 %v404, %v567
      %v569 = vpop.f32.mrb[0].mxu0
      %570 = vmatprep.mubr.f32.mxu0 0.0
      %571 = vmatmul.mubr.f32.gmra.mrb[0].mxu0 %v416
      %v572 = vpop.f32.mrb[0].mxu0
      %v573 = vadd.f32 %v409, %v572
      %v574 = vpop.f32.mrb[0].mxu0
      %575 = vdwg.mxu0
      %s576 = scalar_lea.vmem %s1, 32
      %v577 = vld [vmem:[%s576] sm:$0xff]
      %v578 = vld [vmem:[%s576 + $0x8] sm:$0xff]
      %579 = vrot.lane.b32.xlu0 %v199, 126
      %v580 = vpop.permute.xlu0 %579
      %581 = vrot.lane.b32.xlu0 %v200, 126
      %v582 = vpop.permute.xlu0 %581
      %583 = vrot.lane.b32.xlu0 %v201, 126
      %v584 = vpop.permute.xlu0 %583
      %585 = vrot.lane.b32.xlu0 %v202, 126
      %v586 = vpop.permute.xlu0 %585
      %587 = vrot.lane.b32.xlu0 %v203, 126
      %v588 = vpop.permute.xlu0 %587
      %589 = vrot.lane.b32.xlu0 %v204, 126
      %v590 = vpop.permute.xlu0 %589
      %591 = vrot.lane.b32.xlu0 %v205, 126
      %v592 = vpop.permute.xlu0 %591
      %593 = vrot.lane.b32.xlu0 %v206, 126
      %v594 = vpop.permute.xlu0 %593
      %vm595 = vcmask 1031168
      %v596 = vsel %vm595, %v580, %v582
      %v597 = vsel %vm595, %v582, %v584
      %v598 = vsel %vm595, %v584, %v586
      %v599 = vsel %vm595, %v588, %v590
      %v600 = vsel %vm595, %v590, %v592
      %v601 = vsel %vm595, %v592, %v594
      %v606 = vsel %vm246, %v577, 0
      %v609 = vsel %vm246, %v578, 0
      %v611 = vsel %vm253, %v599, 0
      %v613 = vsel %vm253, %v600, 0
      %v615 = vsel %vm253, %v601, 0
      %617 = vmatprep.subr.mxu0 %v597
      %618 = vmatpush1.msra.mxu0 %v596
      %619 = vmatprep.subr.mxu0 %v613
      %620 = vmatpush1.msra.mxu0 %v611
      %621 = vmatprep.subr.mxu0 0.0
      %622 = vmatpush1.msra.mxu0 0.0
      %623 = vmatprep.subr.mxu0 0.0
      %624 = vmatpush1.msra.mxu0 0.0
      %625 = vmatprep.subr.mxu0 0.0
      %626 = vmatpush1.msra.mxu0 0.0
      %627 = vmatprep.subr.mxu0 0.0
      %628 = vmatpush1.msra.mxu0 0.0
      %629 = vmatprep.subr.mxu0 0.0
      %630 = vmatpush1.msra.mxu0 0.0
      %631 = vmatprep.subr.mxu0 0.0
      %632 = vmatpush1.msra.mxu0 0.0
      %633 = vmatprep.subr.mxu0 0.0
      %634 = vmatpush1.msra.mxu0 0.0
      %635 = vmatprep.subr.mxu0 0.0
      %636 = vmatpush1.msra.mxu0 0.0
      %637 = vmatprep.subr.mxu0 0.0
      %638 = vmatpush1.msra.mxu0 0.0
      %639 = vmatprep.subr.mxu0 0.0
      %640 = vmatpush1.msra.mxu0 0.0
      %641 = vmatprep.subr.mxu0 0.0
      %642 = vmatpush1.msra.mxu0 0.0
      %643 = vmatprep.subr.mxu0 0.0
      %644 = vmatpush1.msra.mxu0 0.0
      %645 = vmatprep.subr.mxu0 0.0
      %646 = vmatpush1.msra.mxu0 0.0
      %647 = vmatprep.subr.mxu0 0.0
      %648 = vmatpush1.msra.mxu0 0.0
      %649 = vmatprep.subr.mxu0 0.0
      %650 = vmatpush1.msra.mxu0 0.0
      %651 = vmatprep.subr.mxu0 0.0
      %652 = vmatpush1.msra.mxu0 0.0
      %653 = vmatprep.subr.mxu0 0.0
      %654 = vmatpush1.msra.mxu0 0.0
      %655 = vmatprep.subr.mxu0 0.0
      %656 = vmatpush1.msra.mxu0 0.0
      %657 = vmatprep.subr.mxu0 0.0
      %658 = vmatpush1.msra.mxu0 0.0
      %659 = vmatprep.subr.mxu0 0.0
      %660 = vmatpush1.msra.mxu0 0.0
      %661 = vmatprep.subr.mxu0 0.0
      %662 = vmatpush1.msra.mxu0 0.0
      %663 = vmatprep.subr.mxu0 0.0
      %664 = vmatpush1.msra.mxu0 0.0
      %665 = vmatprep.subr.mxu0 0.0
      %666 = vmatpush1.msra.mxu0 0.0
      %667 = vmatprep.subr.mxu0 0.0
      %668 = vmatpush1.msra.mxu0 0.0
      %669 = vmatprep.subr.mxu0 0.0
      %670 = vmatpush1.msra.mxu0 0.0
      %671 = vmatprep.subr.mxu0 0.0
      %672 = vmatpush1.msra.mxu0 0.0
      %673 = vmatprep.subr.mxu0 0.0
      %674 = vmatpush1.msra.mxu0 0.0
      %675 = vmatprep.subr.mxu0 0.0
      %676 = vmatpush1.msra.mxu0 0.0
      %677 = vmatprep.subr.mxu0 0.0
      %678 = vmatpush1.msra.mxu0 0.0
      %679 = vmatprep.subr.mxu0 0.0
      %680 = vmatpush1.msra.mxu0 0.0
      %681 = vmatprep.mubr.f32.mxu0 0.0
      %682 = vmatmul.mubr.f32.gmra.mrb[0].mxu0 %v606
      %v683 = vpop.f32.mrb[0].mxu0
      %v684 = vadd.f32 0.0, %v683
      %v685 = vpop.f32.mrb[0].mxu0
      %v686 = vadd.f32 0.0, %v685
      %687 = vmatprep.mubr.f32.mxu0 0.0
      %688 = vmatmul.mubr.f32.gmra.mrb[0].mxu0 %v609
      %v689 = vpop.f32.mrb[0].mxu0
      %v690 = vadd.f32 0.0, %v689
      %v691 = vpop.f32.mrb[0].mxu0
      %v692 = vadd.f32 0.0, %v691
      %693 = vdwg.mxu0
      %694 = vmatprep.subr.mxu0 0.0
      %695 = vmatpush1.msra.mxu0 %v598
      %696 = vmatprep.subr.mxu0 0.0
      %697 = vmatpush1.msra.mxu0 %v615
      %698 = vmatprep.subr.mxu0 0.0
      %699 = vmatpush1.msra.mxu0 0.0
      %700 = vmatprep.subr.mxu0 0.0
      %701 = vmatpush1.msra.mxu0 0.0
      %702 = vmatprep.subr.mxu0 0.0
      %703 = vmatpush1.msra.mxu0 0.0
      %704 = vmatprep.subr.mxu0 0.0
      %705 = vmatpush1.msra.mxu0 0.0
      %706 = vmatprep.subr.mxu0 0.0
      %707 = vmatpush1.msra.mxu0 0.0
      %708 = vmatprep.subr.mxu0 0.0
      %709 = vmatpush1.msra.mxu0 0.0
      %710 = vmatprep.subr.mxu0 0.0
      %711 = vmatpush1.msra.mxu0 0.0
      %712 = vmatprep.subr.mxu0 0.0
      %713 = vmatpush1.msra.mxu0 0.0
      %714 = vmatprep.subr.mxu0 0.0
      %715 = vmatpush1.msra.mxu0 0.0
      %716 = vmatprep.subr.mxu0 0.0
      %717 = vmatpush1.msra.mxu0 0.0
      %718 = vmatprep.subr.mxu0 0.0
      %719 = vmatpush1.msra.mxu0 0.0
      %720 = vmatprep.subr.mxu0 0.0
      %721 = vmatpush1.msra.mxu0 0.0
      %722 = vmatprep.subr.mxu0 0.0
      %723 = vmatpush1.msra.mxu0 0.0
      %724 = vmatprep.subr.mxu0 0.0
      %725 = vmatpush1.msra.mxu0 0.0
      %726 = vmatprep.subr.mxu0 0.0
      %727 = vmatpush1.msra.mxu0 0.0
      %728 = vmatprep.subr.mxu0 0.0
      %729 = vmatpush1.msra.mxu0 0.0
      %730 = vmatprep.subr.mxu0 0.0
      %731 = vmatpush1.msra.mxu0 0.0
      %732 = vmatprep.subr.mxu0 0.0
      %733 = vmatpush1.msra.mxu0 0.0
      %734 = vmatprep.subr.mxu0 0.0
      %735 = vmatpush1.msra.mxu0 0.0
      %736 = vmatprep.subr.mxu0 0.0
      %737 = vmatpush1.msra.mxu0 0.0
      %738 = vmatprep.subr.mxu0 0.0
      %739 = vmatpush1.msra.mxu0 0.0
      %740 = vmatprep.subr.mxu0 0.0
      %741 = vmatpush1.msra.mxu0 0.0
      %742 = vmatprep.subr.mxu0 0.0
      %743 = vmatpush1.msra.mxu0 0.0
      %744 = vmatprep.subr.mxu0 0.0
      %745 = vmatpush1.msra.mxu0 0.0
      %746 = vmatprep.subr.mxu0 0.0
      %747 = vmatpush1.msra.mxu0 0.0
      %748 = vmatprep.subr.mxu0 0.0
      %749 = vmatpush1.msra.mxu0 0.0
      %750 = vmatprep.subr.mxu0 0.0
      %751 = vmatpush1.msra.mxu0 0.0
      %752 = vmatprep.subr.mxu0 0.0
      %753 = vmatpush1.msra.mxu0 0.0
      %754 = vmatprep.subr.mxu0 0.0
      %755 = vmatpush1.msra.mxu0 0.0
      %756 = vmatprep.subr.mxu0 0.0
      %757 = vmatpush1.msra.mxu0 0.0
      %758 = vmatprep.mubr.f32.mxu0 0.0
      %759 = vmatmul.mubr.f32.gmra.mrb[0].mxu0 %v606
      %v760 = vpop.f32.mrb[0].mxu0
      %v761 = vadd.f32 0.0, %v760
      %v762 = vpop.f32.mrb[0].mxu0
      %763 = vmatprep.mubr.f32.mxu0 0.0
      %764 = vmatmul.mubr.f32.gmra.mrb[0].mxu0 %v609
      %v765 = vpop.f32.mrb[0].mxu0
      %v766 = vadd.f32 0.0, %v765
      %v767 = vpop.f32.mrb[0].mxu0
      %768 = vdwg.mxu0
      %v769 = vadd.f32 %v491, %v684
      %v770 = vadd.f32 %v493, %v686
      %v771 = vadd.f32 %v568, %v761
      %v772 = vadd.f32 %v497, %v690
      %v773 = vadd.f32 %v499, %v692
      %v774 = vadd.f32 %v573, %v766
      %s775 = scalar_lea.vmem %s1, 48
      %v776 = vld [vmem:[%s775] sm:$0xff]
      %v777 = vld [vmem:[%s775 + $0x8] sm:$0xff]
      %778 = vrot.lane.b32.xlu0 %v199, 110
      %v779 = vpop.permute.xlu0 %778
      %780 = vrot.lane.b32.xlu0 %v200, 110
      %v781 = vpop.permute.xlu0 %780
      %782 = vrot.lane.b32.xlu0 %v201, 110
      %v783 = vpop.permute.xlu0 %782
      %784 = vrot.lane.b32.xlu0 %v202, 110
      %v785 = vpop.permute.xlu0 %784
      %786 = vrot.lane.b32.xlu0 %v203, 110
      %v787 = vpop.permute.xlu0 %786
      %788 = vrot.lane.b32.xlu0 %v204, 110
      %v789 = vpop.permute.xlu0 %788
      %790 = vrot.lane.b32.xlu0 %v205, 110
      %v791 = vpop.permute.xlu0 %790
      %792 = vrot.lane.b32.xlu0 %v206, 110
      %v793 = vpop.permute.xlu0 %792
      %vm794 = vcmask 900096
      %v795 = vsel %vm794, %v779, %v781
      %v796 = vsel %vm794, %v781, %v783
      %v797 = vsel %vm794, %v783, %v785
      %v798 = vsel %vm794, %v787, %v789
      %v799 = vsel %vm794, %v789, %v791
      %v800 = vsel %vm794, %v791, %v793
      %v805 = vsel %vm246, %v776, 0
      %v808 = vsel %vm246, %v777, 0
      %v810 = vsel %vm253, %v798, 0
      %v812 = vsel %vm253, %v799, 0
      %v814 = vsel %vm253, %v800, 0
      %816 = vmatprep.subr.mxu0 %v796
      %817 = vmatpush1.msra.mxu0 %v795
      %818 = vmatprep.subr.mxu0 %v812
      %819 = vmatpush1.msra.mxu0 %v810
      %820 = vmatprep.subr.mxu0 0.0
      %821 = vmatpush1.msra.mxu0 0.0
      %822 = vmatprep.subr.mxu0 0.0
      %823 = vmatpush1.msra.mxu0 0.0
      %824 = vmatprep.subr.mxu0 0.0
      %825 = vmatpush1.msra.mxu0 0.0
      %826 = vmatprep.subr.mxu0 0.0
      %827 = vmatpush1.msra.mxu0 0.0
      %828 = vmatprep.subr.mxu0 0.0
      %829 = vmatpush1.msra.mxu0 0.0
      %830 = vmatprep.subr.mxu0 0.0
      %831 = vmatpush1.msra.mxu0 0.0
      %832 = vmatprep.subr.mxu0 0.0
      %833 = vmatpush1.msra.mxu0 0.0
      %834 = vmatprep.subr.mxu0 0.0
      %835 = vmatpush1.msra.mxu0 0.0
      %836 = vmatprep.subr.mxu0 0.0
      %837 = vmatpush1.msra.mxu0 0.0
      %838 = vmatprep.subr.mxu0 0.0
      %839 = vmatpush1.msra.mxu0 0.0
      %840 = vmatprep.subr.mxu0 0.0
      %841 = vmatpush1.msra.mxu0 0.0
      %842 = vmatprep.subr.mxu0 0.0
      %843 = vmatpush1.msra.mxu0 0.0
      %844 = vmatprep.subr.mxu0 0.0
      %845 = vmatpush1.msra.mxu0 0.0
      %846 = vmatprep.subr.mxu0 0.0
      %847 = vmatpush1.msra.mxu0 0.0
      %848 = vmatprep.subr.mxu0 0.0
      %849 = vmatpush1.msra.mxu0 0.0
      %850 = vmatprep.subr.mxu0 0.0
      %851 = vmatpush1.msra.mxu0 0.0
      %852 = vmatprep.subr.mxu0 0.0
      %853 = vmatpush1.msra.mxu0 0.0
      %854 = vmatprep.subr.mxu0 0.0
      %855 = vmatpush1.msra.mxu0 0.0
      %856 = vmatprep.subr.mxu0 0.0
      %857 = vmatpush1.msra.mxu0 0.0
      %858 = vmatprep.subr.mxu0 0.0
      %859 = vmatpush1.msra.mxu0 0.0
      %860 = vmatprep.subr.mxu0 0.0
      %861 = vmatpush1.msra.mxu0 0.0
      %862 = vmatprep.subr.mxu0 0.0
      %863 = vmatpush1.msra.mxu0 0.0
      %864 = vmatprep.subr.mxu0 0.0
      %865 = vmatpush1.msra.mxu0 0.0
      %866 = vmatprep.subr.mxu0 0.0
      %867 = vmatpush1.msra.mxu0 0.0
      %868 = vmatprep.subr.mxu0 0.0
      %869 = vmatpush1.msra.mxu0 0.0
      %870 = vmatprep.subr.mxu0 0.0
      %871 = vmatpush1.msra.mxu0 0.0
      %872 = vmatprep.subr.mxu0 0.0
      %873 = vmatpush1.msra.mxu0 0.0
      %874 = vmatprep.subr.mxu0 0.0
      %875 = vmatpush1.msra.mxu0 0.0
      %876 = vmatprep.subr.mxu0 0.0
      %877 = vmatpush1.msra.mxu0 0.0
      %878 = vmatprep.subr.mxu0 0.0
      %879 = vmatpush1.msra.mxu0 0.0
      %880 = vmatprep.mubr.f32.mxu0 0.0
      %881 = vmatmul.mubr.f32.gmra.mrb[0].mxu0 %v805
      %v882 = vpop.f32.mrb[0].mxu0
      %v883 = vadd.f32 0.0, %v882
      %v884 = vpop.f32.mrb[0].mxu0
      %v885 = vadd.f32 0.0, %v884
      %886 = vmatprep.mubr.f32.mxu0 0.0
      %887 = vmatmul.mubr.f32.gmra.mrb[0].mxu0 %v808
      %v888 = vpop.f32.mrb[0].mxu0
      %v889 = vadd.f32 0.0, %v888
      %v890 = vpop.f32.mrb[0].mxu0
      %v891 = vadd.f32 0.0, %v890
      %892 = vdwg.mxu0
      %893 = vmatprep.subr.mxu0 0.0
      %894 = vmatpush1.msra.mxu0 %v797
      %895 = vmatprep.subr.mxu0 0.0
      %896 = vmatpush1.msra.mxu0 %v814
      %897 = vmatprep.subr.mxu0 0.0
      %898 = vmatpush1.msra.mxu0 0.0
      %899 = vmatprep.subr.mxu0 0.0
      %900 = vmatpush1.msra.mxu0 0.0
      %901 = vmatprep.subr.mxu0 0.0
      %902 = vmatpush1.msra.mxu0 0.0
      %903 = vmatprep.subr.mxu0 0.0
      %904 = vmatpush1.msra.mxu0 0.0
      %905 = vmatprep.subr.mxu0 0.0
      %906 = vmatpush1.msra.mxu0 0.0
      %907 = vmatprep.subr.mxu0 0.0
      %908 = vmatpush1.msra.mxu0 0.0
      %909 = vmatprep.subr.mxu0 0.0
      %910 = vmatpush1.msra.mxu0 0.0
      %911 = vmatprep.subr.mxu0 0.0
      %912 = vmatpush1.msra.mxu0 0.0
      %913 = vmatprep.subr.mxu0 0.0
      %914 = vmatpush1.msra.mxu0 0.0
      %915 = vmatprep.subr.mxu0 0.0
      %916 = vmatpush1.msra.mxu0 0.0
      %917 = vmatprep.subr.mxu0 0.0
      %918 = vmatpush1.msra.mxu0 0.0
      %919 = vmatprep.subr.mxu0 0.0
      %920 = vmatpush1.msra.mxu0 0.0
      %921 = vmatprep.subr.mxu0 0.0
      %922 = vmatpush1.msra.mxu0 0.0
      %923 = vmatprep.subr.mxu0 0.0
      %924 = vmatpush1.msra.mxu0 0.0
      %925 = vmatprep.subr.mxu0 0.0
      %926 = vmatpush1.msra.mxu0 0.0
      %927 = vmatprep.subr.mxu0 0.0
      %928 = vmatpush1.msra.mxu0 0.0
      %929 = vmatprep.subr.mxu0 0.0
      %930 = vmatpush1.msra.mxu0 0.0
      %931 = vmatprep.subr.mxu0 0.0
      %932 = vmatpush1.msra.mxu0 0.0
      %933 = vmatprep.subr.mxu0 0.0
      %934 = vmatpush1.msra.mxu0 0.0
      %935 = vmatprep.subr.mxu0 0.0
      %936 = vmatpush1.msra.mxu0 0.0
      %937 = vmatprep.subr.mxu0 0.0
      %938 = vmatpush1.msra.mxu0 0.0
      %939 = vmatprep.subr.mxu0 0.0
      %940 = vmatpush1.msra.mxu0 0.0
      %941 = vmatprep.subr.mxu0 0.0
      %942 = vmatpush1.msra.mxu0 0.0
      %943 = vmatprep.subr.mxu0 0.0
      %944 = vmatpush1.msra.mxu0 0.0
      %945 = vmatprep.subr.mxu0 0.0
      %946 = vmatpush1.msra.mxu0 0.0
      %947 = vmatprep.subr.mxu0 0.0
      %948 = vmatpush1.msra.mxu0 0.0
      %949 = vmatprep.subr.mxu0 0.0
      %950 = vmatpush1.msra.mxu0 0.0
      %951 = vmatprep.subr.mxu0 0.0
      %952 = vmatpush1.msra.mxu0 0.0
      %953 = vmatprep.subr.mxu0 0.0
      %954 = vmatpush1.msra.mxu0 0.0
      %955 = vmatprep.subr.mxu0 0.0
      %956 = vmatpush1.msra.mxu0 0.0
      %957 = vmatprep.mubr.f32.mxu0 0.0
      %958 = vmatmul.mubr.f32.gmra.mrb[0].mxu0 %v805
      %v959 = vpop.f32.mrb[0].mxu0
      %v960 = vadd.f32 0.0, %v959
      %v961 = vpop.f32.mrb[0].mxu0
      %962 = vmatprep.mubr.f32.mxu0 0.0
      %963 = vmatmul.mubr.f32.gmra.mrb[0].mxu0 %v808
      %v964 = vpop.f32.mrb[0].mxu0
      %v965 = vadd.f32 0.0, %v964
      %v966 = vpop.f32.mrb[0].mxu0
      %967 = vdwg.mxu0
      %v968 = vadd.f32 %v769, %v883
      %v969 = vadd.f32 %v770, %v885
      %v970 = vadd.f32 %v771, %v960
      %v971 = vadd.f32 %v772, %v889
      %v972 = vadd.f32 %v773, %v891
      %v973 = vadd.f32 %v774, %v965
      %s974 = scalar_lea.vmem %s1, 64
      %v975 = vld [vmem:[%s974] sm:$0xff]
      %v976 = vld [vmem:[%s974 + $0x8] sm:$0xff]
      %977 = vrot.lane.b32.xlu0 %v199, 109
      %v978 = vpop.permute.xlu0 %977
      %979 = vrot.lane.b32.xlu0 %v200, 109
      %v980 = vpop.permute.xlu0 %979
      %981 = vrot.lane.b32.xlu0 %v201, 109
      %v982 = vpop.permute.xlu0 %981
      %983 = vrot.lane.b32.xlu0 %v202, 109
      %v984 = vpop.permute.xlu0 %983
      %985 = vrot.lane.b32.xlu0 %v203, 109
      %v986 = vpop.permute.xlu0 %985
      %987 = vrot.lane.b32.xlu0 %v204, 109
      %v988 = vpop.permute.xlu0 %987
      %989 = vrot.lane.b32.xlu0 %v205, 109
      %v990 = vpop.permute.xlu0 %989
      %991 = vrot.lane.b32.xlu0 %v206, 109
      %v992 = vpop.permute.xlu0 %991
      %vm993 = vcmask 891904
      %v994 = vsel %vm993, %v978, %v980
      %v995 = vsel %vm993, %v980, %v982
      %v996 = vsel %vm993, %v982, %v984
      %v997 = vsel %vm993, %v986, %v988
      %v998 = vsel %vm993, %v988, %v990
      %v999 = vsel %vm993, %v990, %v992
      %v1004 = vsel %vm246, %v975, 0
      %v1007 = vsel %vm246, %v976, 0
      %v1009 = vsel %vm253, %v997, 0
      %v1011 = vsel %vm253, %v998, 0
      %v1013 = vsel %vm253, %v999, 0
      %1015 = vmatprep.subr.mxu0 %v995
      %1016 = vmatpush1.msra.mxu0 %v994
      %1017 = vmatprep.subr.mxu0 %v1011
      %1018 = vmatpush1.msra.mxu0 %v1009
      %1019 = vmatprep.subr.mxu0 0.0
      %1020 = vmatpush1.msra.mxu0 0.0
      %1021 = vmatprep.subr.mxu0 0.0
      %1022 = vmatpush1.msra.mxu0 0.0
      %1023 = vmatprep.subr.mxu0 0.0
      %1024 = vmatpush1.msra.mxu0 0.0
      %1025 = vmatprep.subr.mxu0 0.0
      %1026 = vmatpush1.msra.mxu0 0.0
      %1027 = vmatprep.subr.mxu0 0.0
      %1028 = vmatpush1.msra.mxu0 0.0
      %1029 = vmatprep.subr.mxu0 0.0
      %1030 = vmatpush1.msra.mxu0 0.0
      %1031 = vmatprep.subr.mxu0 0.0
      %1032 = vmatpush1.msra.mxu0 0.0
      %1033 = vmatprep.subr.mxu0 0.0
      %1034 = vmatpush1.msra.mxu0 0.0
      %1035 = vmatprep.subr.mxu0 0.0
      %1036 = vmatpush1.msra.mxu0 0.0
      %1037 = vmatprep.subr.mxu0 0.0
      %1038 = vmatpush1.msra.mxu0 0.0
      %1039 = vmatprep.subr.mxu0 0.0
      %1040 = vmatpush1.msra.mxu0 0.0
      %1041 = vmatprep.subr.mxu0 0.0
      %1042 = vmatpush1.msra.mxu0 0.0
      %1043 = vmatprep.subr.mxu0 0.0
      %1044 = vmatpush1.msra.mxu0 0.0
      %1045 = vmatprep.subr.mxu0 0.0
      %1046 = vmatpush1.msra.mxu0 0.0
      %1047 = vmatprep.subr.mxu0 0.0
      %1048 = vmatpush1.msra.mxu0 0.0
      %1049 = vmatprep.subr.mxu0 0.0
      %1050 = vmatpush1.msra.mxu0 0.0
      %1051 = vmatprep.subr.mxu0 0.0
      %1052 = vmatpush1.msra.mxu0 0.0
      %1053 = vmatprep.subr.mxu0 0.0
      %1054 = vmatpush1.msra.mxu0 0.0
      %1055 = vmatprep.subr.mxu0 0.0
      %1056 = vmatpush1.msra.mxu0 0.0
      %1057 = vmatprep.subr.mxu0 0.0
      %1058 = vmatpush1.msra.mxu0 0.0
      %1059 = vmatprep.subr.mxu0 0.0
      %1060 = vmatpush1.msra.mxu0 0.0
      %1061 = vmatprep.subr.mxu0 0.0
      %1062 = vmatpush1.msra.mxu0 0.0
      %1063 = vmatprep.subr.mxu0 0.0
      %1064 = vmatpush1.msra.mxu0 0.0
      %1065 = vmatprep.subr.mxu0 0.0
      %1066 = vmatpush1.msra.mxu0 0.0
      %1067 = vmatprep.subr.mxu0 0.0
      %1068 = vmatpush1.msra.mxu0 0.0
      %1069 = vmatprep.subr.mxu0 0.0
      %1070 = vmatpush1.msra.mxu0 0.0
      %1071 = vmatprep.subr.mxu0 0.0
      %1072 = vmatpush1.msra.mxu0 0.0
      %1073 = vmatprep.subr.mxu0 0.0
      %1074 = vmatpush1.msra.mxu0 0.0
      %1075 = vmatprep.subr.mxu0 0.0
      %1076 = vmatpush1.msra.mxu0 0.0
      %1077 = vmatprep.subr.mxu0 0.0
      %1078 = vmatpush1.msra.mxu0 0.0
      %1079 = vmatprep.mubr.f32.mxu0 0.0
      %1080 = vmatmul.mubr.f32.gmra.mrb[0].mxu0 %v1004
      %v1081 = vpop.f32.mrb[0].mxu0
      %v1082 = vadd.f32 0.0, %v1081
      %v1083 = vpop.f32.mrb[0].mxu0
      %v1084 = vadd.f32 0.0, %v1083
      %1085 = vmatprep.mubr.f32.mxu0 0.0
      %1086 = vmatmul.mubr.f32.gmra.mrb[0].mxu0 %v1007
      %v1087 = vpop.f32.mrb[0].mxu0
      %v1088 = vadd.f32 0.0, %v1087
      %v1089 = vpop.f32.mrb[0].mxu0
      %v1090 = vadd.f32 0.0, %v1089
      %1091 = vdwg.mxu0
      %1092 = vmatprep.subr.mxu0 0.0
      %1093 = vmatpush1.msra.mxu0 %v996
      %1094 = vmatprep.subr.mxu0 0.0
      %1095 = vmatpush1.msra.mxu0 %v1013
      %1096 = vmatprep.subr.mxu0 0.0
      %1097 = vmatpush1.msra.mxu0 0.0
      %1098 = vmatprep.subr.mxu0 0.0
      %1099 = vmatpush1.msra.mxu0 0.0
      %1100 = vmatprep.subr.mxu0 0.0
      %1101 = vmatpush1.msra.mxu0 0.0
      %1102 = vmatprep.subr.mxu0 0.0
      %1103 = vmatpush1.msra.mxu0 0.0
      %1104 = vmatprep.subr.mxu0 0.0
      %1105 = vmatpush1.msra.mxu0 0.0
      %1106 = vmatprep.subr.mxu0 0.0
      %1107 = vmatpush1.msra.mxu0 0.0
      %1108 = vmatprep.subr.mxu0 0.0
      %1109 = vmatpush1.msra.mxu0 0.0
      %1110 = vmatprep.subr.mxu0 0.0
      %1111 = vmatpush1.msra.mxu0 0.0
      %1112 = vmatprep.subr.mxu0 0.0
      %1113 = vmatpush1.msra.mxu0 0.0
      %1114 = vmatprep.subr.mxu0 0.0
      %1115 = vmatpush1.msra.mxu0 0.0
      %1116 = vmatprep.subr.mxu0 0.0
      %1117 = vmatpush1.msra.mxu0 0.0
      %1118 = vmatprep.subr.mxu0 0.0
      %1119 = vmatpush1.msra.mxu0 0.0
      %1120 = vmatprep.subr.mxu0 0.0
      %1121 = vmatpush1.msra.mxu0 0.0
      %1122 = vmatprep.subr.mxu0 0.0
      %1123 = vmatpush1.msra.mxu0 0.0
      %1124 = vmatprep.subr.mxu0 0.0
      %1125 = vmatpush1.msra.mxu0 0.0
      %1126 = vmatprep.subr.mxu0 0.0
      %1127 = vmatpush1.msra.mxu0 0.0
      %1128 = vmatprep.subr.mxu0 0.0
      %1129 = vmatpush1.msra.mxu0 0.0
      %1130 = vmatprep.subr.mxu0 0.0
      %1131 = vmatpush1.msra.mxu0 0.0
      %1132 = vmatprep.subr.mxu0 0.0
      %1133 = vmatpush1.msra.mxu0 0.0
      %1134 = vmatprep.subr.mxu0 0.0
      %1135 = vmatpush1.msra.mxu0 0.0
      %1136 = vmatprep.subr.mxu0 0.0
      %1137 = vmatpush1.msra.mxu0 0.0
      %1138 = vmatprep.subr.mxu0 0.0
      %1139 = vmatpush1.msra.mxu0 0.0
      %1140 = vmatprep.subr.mxu0 0.0
      %1141 = vmatpush1.msra.mxu0 0.0
      %1142 = vmatprep.subr.mxu0 0.0
      %1143 = vmatpush1.msra.mxu0 0.0
      %1144 = vmatprep.subr.mxu0 0.0
      %1145 = vmatpush1.msra.mxu0 0.0
      %1146 = vmatprep.subr.mxu0 0.0
      %1147 = vmatpush1.msra.mxu0 0.0
      %1148 = vmatprep.subr.mxu0 0.0
      %1149 = vmatpush1.msra.mxu0 0.0
      %1150 = vmatprep.subr.mxu0 0.0
      %1151 = vmatpush1.msra.mxu0 0.0
      %1152 = vmatprep.subr.mxu0 0.0
      %1153 = vmatpush1.msra.mxu0 0.0
      %1154 = vmatprep.subr.mxu0 0.0
      %1155 = vmatpush1.msra.mxu0 0.0
      %1156 = vmatprep.mubr.f32.mxu0 0.0
      %1157 = vmatmul.mubr.f32.gmra.mrb[0].mxu0 %v1004
      %v1158 = vpop.f32.mrb[0].mxu0
      %v1159 = vadd.f32 0.0, %v1158
      %v1160 = vpop.f32.mrb[0].mxu0
      %1161 = vmatprep.mubr.f32.mxu0 0.0
      %1162 = vmatmul.mubr.f32.gmra.mrb[0].mxu0 %v1007
      %v1163 = vpop.f32.mrb[0].mxu0
      %v1164 = vadd.f32 0.0, %v1163
      %v1165 = vpop.f32.mrb[0].mxu0
      %1166 = vdwg.mxu0
      %v1167 = vadd.f32 %v968, %v1082
      %v1168 = vadd.f32 %v969, %v1084
      %v1169 = vadd.f32 %v970, %v1159
      %v1170 = vadd.f32 %v971, %v1088
      %v1171 = vadd.f32 %v972, %v1090
      %v1172 = vadd.f32 %v973, %v1164
      %s1173 = scalar_lea.vmem %s1, 80
      %v1174 = vld [vmem:[%s1173] sm:$0xff]
      %v1175 = vld [vmem:[%s1173 + $0x8] sm:$0xff]
      %1176 = vrot.lane.b32.xlu0 %v199, 108
      %v1177 = vpop.permute.xlu0 %1176
      %1178 = vrot.lane.b32.xlu0 %v200, 108
      %v1179 = vpop.permute.xlu0 %1178
      %1180 = vrot.lane.b32.xlu0 %v201, 108
      %v1181 = vpop.permute.xlu0 %1180
      %1182 = vrot.lane.b32.xlu0 %v202, 108
      %v1183 = vpop.permute.xlu0 %1182
      %1184 = vrot.lane.b32.xlu0 %v203, 108
      %v1185 = vpop.permute.xlu0 %1184
      %1186 = vrot.lane.b32.xlu0 %v204, 108
      %v1187 = vpop.permute.xlu0 %1186
      %1188 = vrot.lane.b32.xlu0 %v205, 108
      %v1189 = vpop.permute.xlu0 %1188
      %1190 = vrot.lane.b32.xlu0 %v206, 108
      %v1191 = vpop.permute.xlu0 %1190
      %vm1192 = vcmask 883712
      %v1193 = vsel %vm1192, %v1177, %v1179
      %v1194 = vsel %vm1192, %v1179, %v1181
      %v1195 = vsel %vm1192, %v1181, %v1183
      %v1196 = vsel %vm1192, %v1185, %v1187
      %v1197 = vsel %vm1192, %v1187, %v1189
      %v1198 = vsel %vm1192, %v1189, %v1191
      %v1203 = vsel %vm246, %v1174, 0
      %v1206 = vsel %vm246, %v1175, 0
      %v1208 = vsel %vm253, %v1196, 0
      %v1210 = vsel %vm253, %v1197, 0
      %v1212 = vsel %vm253, %v1198, 0
      %1214 = vmatprep.subr.mxu0 %v1194
      %1215 = vmatpush1.msra.mxu0 %v1193
      %1216 = vmatprep.subr.mxu0 %v1210
      %1217 = vmatpush1.msra.mxu0 %v1208
      %1218 = vmatprep.subr.mxu0 0.0
      %1219 = vmatpush1.msra.mxu0 0.0
      %1220 = vmatprep.subr.mxu0 0.0
      %1221 = vmatpush1.msra.mxu0 0.0
      %1222 = vmatprep.subr.mxu0 0.0
      %1223 = vmatpush1.msra.mxu0 0.0
      %1224 = vmatprep.subr.mxu0 0.0
      %1225 = vmatpush1.msra.mxu0 0.0
      %1226 = vmatprep.subr.mxu0 0.0
      %1227 = vmatpush1.msra.mxu0 0.0
      %1228 = vmatprep.subr.mxu0 0.0
      %1229 = vmatpush1.msra.mxu0 0.0
      %1230 = vmatprep.subr.mxu0 0.0
      %1231 = vmatpush1.msra.mxu0 0.0
      %1232 = vmatprep.subr.mxu0 0.0
      %1233 = vmatpush1.msra.mxu0 0.0
      %1234 = vmatprep.subr.mxu0 0.0
      %1235 = vmatpush1.msra.mxu0 0.0
      %1236 = vmatprep.subr.mxu0 0.0
      %1237 = vmatpush1.msra.mxu0 0.0
      %1238 = vmatprep.subr.mxu0 0.0
      %1239 = vmatpush1.msra.mxu0 0.0
      %1240 = vmatprep.subr.mxu0 0.0
      %1241 = vmatpush1.msra.mxu0 0.0
      %1242 = vmatprep.subr.mxu0 0.0
      %1243 = vmatpush1.msra.mxu0 0.0
      %1244 = vmatprep.subr.mxu0 0.0
      %1245 = vmatpush1.msra.mxu0 0.0
      %1246 = vmatprep.subr.mxu0 0.0
      %1247 = vmatpush1.msra.mxu0 0.0
      %1248 = vmatprep.subr.mxu0 0.0
      %1249 = vmatpush1.msra.mxu0 0.0
      %1250 = vmatprep.subr.mxu0 0.0
      %1251 = vmatpush1.msra.mxu0 0.0
      %1252 = vmatprep.subr.mxu0 0.0
      %1253 = vmatpush1.msra.mxu0 0.0
      %1254 = vmatprep.subr.mxu0 0.0
      %1255 = vmatpush1.msra.mxu0 0.0
      %1256 = vmatprep.subr.mxu0 0.0
      %1257 = vmatpush1.msra.mxu0 0.0
      %1258 = vmatprep.subr.mxu0 0.0
      %1259 = vmatpush1.msra.mxu0 0.0
      %1260 = vmatprep.subr.mxu0 0.0
      %1261 = vmatpush1.msra.mxu0 0.0
      %1262 = vmatprep.subr.mxu0 0.0
      %1263 = vmatpush1.msra.mxu0 0.0
      %1264 = vmatprep.subr.mxu0 0.0
      %1265 = vmatpush1.msra.mxu0 0.0
      %1266 = vmatprep.subr.mxu0 0.0
      %1267 = vmatpush1.msra.mxu0 0.0
      %1268 = vmatprep.subr.mxu0 0.0
      %1269 = vmatpush1.msra.mxu0 0.0
      %1270 = vmatprep.subr.mxu0 0.0
      %1271 = vmatpush1.msra.mxu0 0.0
      %1272 = vmatprep.subr.mxu0 0.0
      %1273 = vmatpush1.msra.mxu0 0.0
      %1274 = vmatprep.subr.mxu0 0.0
      %1275 = vmatpush1.msra.mxu0 0.0
      %1276 = vmatprep.subr.mxu0 0.0
      %1277 = vmatpush1.msra.mxu0 0.0
      %1278 = vmatprep.mubr.f32.mxu0 0.0
      %1279 = vmatmul.mubr.f32.gmra.mrb[0].mxu0 %v1203
      %v1280 = vpop.f32.mrb[0].mxu0
      %v1281 = vadd.f32 0.0, %v1280
      %v1282 = vpop.f32.mrb[0].mxu0
      %v1283 = vadd.f32 0.0, %v1282
      %1284 = vmatprep.mubr.f32.mxu0 0.0
      %1285 = vmatmul.mubr.f32.gmra.mrb[0].mxu0 %v1206
      %v1286 = vpop.f32.mrb[0].mxu0
      %v1287 = vadd.f32 0.0, %v1286
      %v1288 = vpop.f32.mrb[0].mxu0
      %v1289 = vadd.f32 0.0, %v1288
      %1290 = vdwg.mxu0
      %1291 = vmatprep.subr.mxu0 0.0
      %1292 = vmatpush1.msra.mxu0 %v1195
      %1293 = vmatprep.subr.mxu0 0.0
      %1294 = vmatpush1.msra.mxu0 %v1212
      %1295 = vmatprep.subr.mxu0 0.0
      %1296 = vmatpush1.msra.mxu0 0.0
      %1297 = vmatprep.subr.mxu0 0.0
      %1298 = vmatpush1.msra.mxu0 0.0
      %1299 = vmatprep.subr.mxu0 0.0
      %1300 = vmatpush1.msra.mxu0 0.0
      %1301 = vmatprep.subr.mxu0 0.0
      %1302 = vmatpush1.msra.mxu0 0.0
      %1303 = vmatprep.subr.mxu0 0.0
      %1304 = vmatpush1.msra.mxu0 0.0
      %1305 = vmatprep.subr.mxu0 0.0
      %1306 = vmatpush1.msra.mxu0 0.0
      %1307 = vmatprep.subr.mxu0 0.0
      %1308 = vmatpush1.msra.mxu0 0.0
      %1309 = vmatprep.subr.mxu0 0.0
      %1310 = vmatpush1.msra.mxu0 0.0
      %1311 = vmatprep.subr.mxu0 0.0
      %1312 = vmatpush1.msra.mxu0 0.0
      %1313 = vmatprep.subr.mxu0 0.0
      %1314 = vmatpush1.msra.mxu0 0.0
      %1315 = vmatprep.subr.mxu0 0.0
      %1316 = vmatpush1.msra.mxu0 0.0
      %1317 = vmatprep.subr.mxu0 0.0
      %1318 = vmatpush1.msra.mxu0 0.0
      %1319 = vmatprep.subr.mxu0 0.0
      %1320 = vmatpush1.msra.mxu0 0.0
      %1321 = vmatprep.subr.mxu0 0.0
      %1322 = vmatpush1.msra.mxu0 0.0
      %1323 = vmatprep.subr.mxu0 0.0
      %1324 = vmatpush1.msra.mxu0 0.0
      %1325 = vmatprep.subr.mxu0 0.0
      %1326 = vmatpush1.msra.mxu0 0.0
      %1327 = vmatprep.subr.mxu0 0.0
      %1328 = vmatpush1.msra.mxu0 0.0
      %1329 = vmatprep.subr.mxu0 0.0
      %1330 = vmatpush1.msra.mxu0 0.0
      %1331 = vmatprep.subr.mxu0 0.0
      %1332 = vmatpush1.msra.mxu0 0.0
      %1333 = vmatprep.subr.mxu0 0.0
      %1334 = vmatpush1.msra.mxu0 0.0
      %1335 = vmatprep.subr.mxu0 0.0
      %1336 = vmatpush1.msra.mxu0 0.0
      %1337 = vmatprep.subr.mxu0 0.0
      %1338 = vmatpush1.msra.mxu0 0.0
      %1339 = vmatprep.subr.mxu0 0.0
      %1340 = vmatpush1.msra.mxu0 0.0
      %1341 = vmatprep.subr.mxu0 0.0
      %1342 = vmatpush1.msra.mxu0 0.0
      %1343 = vmatprep.subr.mxu0 0.0
      %1344 = vmatpush1.msra.mxu0 0.0
      %1345 = vmatprep.subr.mxu0 0.0
      %1346 = vmatpush1.msra.mxu0 0.0
      %1347 = vmatprep.subr.mxu0 0.0
      %1348 = vmatpush1.msra.mxu0 0.0
      %1349 = vmatprep.subr.mxu0 0.0
      %1350 = vmatpush1.msra.mxu0 0.0
      %1351 = vmatprep.subr.mxu0 0.0
      %1352 = vmatpush1.msra.mxu0 0.0
      %1353 = vmatprep.subr.mxu0 0.0
      %1354 = vmatpush1.msra.mxu0 0.0
      %1355 = vmatprep.mubr.f32.mxu0 0.0
      %1356 = vmatmul.mubr.f32.gmra.mrb[0].mxu0 %v1203
      %v1357 = vpop.f32.mrb[0].mxu0
      %v1358 = vadd.f32 0.0, %v1357
      %v1359 = vpop.f32.mrb[0].mxu0
      %1360 = vmatprep.mubr.f32.mxu0 0.0
      %1361 = vmatmul.mubr.f32.gmra.mrb[0].mxu0 %v1206
      %v1362 = vpop.f32.mrb[0].mxu0
      %v1363 = vadd.f32 0.0, %v1362
      %v1364 = vpop.f32.mrb[0].mxu0
      %1365 = vdwg.mxu0
      %v1366 = vadd.f32 %v1167, %v1281
      %v1367 = vadd.f32 %v1168, %v1283
      %v1368 = vadd.f32 %v1169, %v1358
      %v1369 = vadd.f32 %v1170, %v1287
      %v1370 = vadd.f32 %v1171, %v1289
      %v1371 = vadd.f32 %v1172, %v1363
      %s1372 = scalar_lea.vmem %s1, 96
      %v1373 = vld [vmem:[%s1372] sm:$0xff]
      %v1374 = vld [vmem:[%s1372 + $0x8] sm:$0xff]
      %1375 = vrot.lane.b32.xlu0 %v199, 92
      %v1376 = vpop.permute.xlu0 %1375
      %1377 = vrot.lane.b32.xlu0 %v200, 92
      %v1378 = vpop.permute.xlu0 %1377
      %1379 = vrot.lane.b32.xlu0 %v201, 92
      %v1380 = vpop.permute.xlu0 %1379
      %1381 = vrot.lane.b32.xlu0 %v202, 92
      %v1382 = vpop.permute.xlu0 %1381
      %1383 = vrot.lane.b32.xlu0 %v203, 92
      %v1384 = vpop.permute.xlu0 %1383
      %1385 = vrot.lane.b32.xlu0 %v204, 92
      %v1386 = vpop.permute.xlu0 %1385
      %1387 = vrot.lane.b32.xlu0 %v205, 92
      %v1388 = vpop.permute.xlu0 %1387
      %1389 = vrot.lane.b32.xlu0 %v206, 92
      %v1390 = vpop.permute.xlu0 %1389
      %vm1391 = vcmask 752640
      %v1392 = vsel %vm1391, %v1376, %v1378
      %v1393 = vsel %vm1391, %v1378, %v1380
      %v1394 = vsel %vm1391, %v1380, %v1382
      %v1395 = vsel %vm1391, %v1384, %v1386
      %v1396 = vsel %vm1391, %v1386, %v1388
      %v1397 = vsel %vm1391, %v1388, %v1390
      %v1402 = vsel %vm246, %v1373, 0
      %v1405 = vsel %vm246, %v1374, 0
      %v1407 = vsel %vm253, %v1395, 0
      %v1409 = vsel %vm253, %v1396, 0
      %v1411 = vsel %vm253, %v1397, 0
      %1413 = vmatprep.subr.mxu0 %v1393
      %1414 = vmatpush1.msra.mxu0 %v1392
      %1415 = vmatprep.subr.mxu0 %v1409
      %1416 = vmatpush1.msra.mxu0 %v1407
      %1417 = vmatprep.subr.mxu0 0.0
      %1418 = vmatpush1.msra.mxu0 0.0
      %1419 = vmatprep.subr.mxu0 0.0
      %1420 = vmatpush1.msra.mxu0 0.0
      %1421 = vmatprep.subr.mxu0 0.0
      %1422 = vmatpush1.msra.mxu0 0.0
      %1423 = vmatprep.subr.mxu0 0.0
      %1424 = vmatpush1.msra.mxu0 0.0
      %1425 = vmatprep.subr.mxu0 0.0
      %1426 = vmatpush1.msra.mxu0 0.0
      %1427 = vmatprep.subr.mxu0 0.0
      %1428 = vmatpush1.msra.mxu0 0.0
      %1429 = vmatprep.subr.mxu0 0.0
      %1430 = vmatpush1.msra.mxu0 0.0
      %1431 = vmatprep.subr.mxu0 0.0
      %1432 = vmatpush1.msra.mxu0 0.0
      %1433 = vmatprep.subr.mxu0 0.0
      %1434 = vmatpush1.msra.mxu0 0.0
      %1435 = vmatprep.subr.mxu0 0.0
      %1436 = vmatpush1.msra.mxu0 0.0
      %1437 = vmatprep.subr.mxu0 0.0
      %1438 = vmatpush1.msra.mxu0 0.0
      %1439 = vmatprep.subr.mxu0 0.0
      %1440 = vmatpush1.msra.mxu0 0.0
      %1441 = vmatprep.subr.mxu0 0.0
      %1442 = vmatpush1.msra.mxu0 0.0
      %1443 = vmatprep.subr.mxu0 0.0
      %1444 = vmatpush1.msra.mxu0 0.0
      %1445 = vmatprep.subr.mxu0 0.0
      %1446 = vmatpush1.msra.mxu0 0.0
      %1447 = vmatprep.subr.mxu0 0.0
      %1448 = vmatpush1.msra.mxu0 0.0
      %1449 = vmatprep.subr.mxu0 0.0
      %1450 = vmatpush1.msra.mxu0 0.0
      %1451 = vmatprep.subr.mxu0 0.0
      %1452 = vmatpush1.msra.mxu0 0.0
      %1453 = vmatprep.subr.mxu0 0.0
      %1454 = vmatpush1.msra.mxu0 0.0
      %1455 = vmatprep.subr.mxu0 0.0
      %1456 = vmatpush1.msra.mxu0 0.0
      %1457 = vmatprep.subr.mxu0 0.0
      %1458 = vmatpush1.msra.mxu0 0.0
      %1459 = vmatprep.subr.mxu0 0.0
      %1460 = vmatpush1.msra.mxu0 0.0
      %1461 = vmatprep.subr.mxu0 0.0
      %1462 = vmatpush1.msra.mxu0 0.0
      %1463 = vmatprep.subr.mxu0 0.0
      %1464 = vmatpush1.msra.mxu0 0.0
      %1465 = vmatprep.subr.mxu0 0.0
      %1466 = vmatpush1.msra.mxu0 0.0
      %1467 = vmatprep.subr.mxu0 0.0
      %1468 = vmatpush1.msra.mxu0 0.0
      %1469 = vmatprep.subr.mxu0 0.0
      %1470 = vmatpush1.msra.mxu0 0.0
      %1471 = vmatprep.subr.mxu0 0.0
      %1472 = vmatpush1.msra.mxu0 0.0
      %1473 = vmatprep.subr.mxu0 0.0
      %1474 = vmatpush1.msra.mxu0 0.0
      %1475 = vmatprep.subr.mxu0 0.0
      %1476 = vmatpush1.msra.mxu0 0.0
      %1477 = vmatprep.mubr.f32.mxu0 0.0
      %1478 = vmatmul.mubr.f32.gmra.mrb[0].mxu0 %v1402
      %v1479 = vpop.f32.mrb[0].mxu0
      %v1480 = vadd.f32 0.0, %v1479
      %v1481 = vpop.f32.mrb[0].mxu0
      %v1482 = vadd.f32 0.0, %v1481
      %1483 = vmatprep.mubr.f32.mxu0 0.0
      %1484 = vmatmul.mubr.f32.gmra.mrb[0].mxu0 %v1405
      %v1485 = vpop.f32.mrb[0].mxu0
      %v1486 = vadd.f32 0.0, %v1485
      %v1487 = vpop.f32.mrb[0].mxu0
      %v1488 = vadd.f32 0.0, %v1487
      %1489 = vdwg.mxu0
      %1490 = vmatprep.subr.mxu0 0.0
      %1491 = vmatpush1.msra.mxu0 %v1394
      %1492 = vmatprep.subr.mxu0 0.0
      %1493 = vmatpush1.msra.mxu0 %v1411
      %1494 = vmatprep.subr.mxu0 0.0
      %1495 = vmatpush1.msra.mxu0 0.0
      %1496 = vmatprep.subr.mxu0 0.0
      %1497 = vmatpush1.msra.mxu0 0.0
      %1498 = vmatprep.subr.mxu0 0.0
      %1499 = vmatpush1.msra.mxu0 0.0
      %1500 = vmatprep.subr.mxu0 0.0
      %1501 = vmatpush1.msra.mxu0 0.0
      %1502 = vmatprep.subr.mxu0 0.0
      %1503 = vmatpush1.msra.mxu0 0.0
      %1504 = vmatprep.subr.mxu0 0.0
      %1505 = vmatpush1.msra.mxu0 0.0
      %1506 = vmatprep.subr.mxu0 0.0
      %1507 = vmatpush1.msra.mxu0 0.0
      %1508 = vmatprep.subr.mxu0 0.0
      %1509 = vmatpush1.msra.mxu0 0.0
      %1510 = vmatprep.subr.mxu0 0.0
      %1511 = vmatpush1.msra.mxu0 0.0
      %1512 = vmatprep.subr.mxu0 0.0
      %1513 = vmatpush1.msra.mxu0 0.0
      %1514 = vmatprep.subr.mxu0 0.0
      %1515 = vmatpush1.msra.mxu0 0.0
      %1516 = vmatprep.subr.mxu0 0.0
      %1517 = vmatpush1.msra.mxu0 0.0
      %1518 = vmatprep.subr.mxu0 0.0
      %1519 = vmatpush1.msra.mxu0 0.0
      %1520 = vmatprep.subr.mxu0 0.0
      %1521 = vmatpush1.msra.mxu0 0.0
      %1522 = vmatprep.subr.mxu0 0.0
      %1523 = vmatpush1.msra.mxu0 0.0
      %1524 = vmatprep.subr.mxu0 0.0
      %1525 = vmatpush1.msra.mxu0 0.0
      %1526 = vmatprep.subr.mxu0 0.0
      %1527 = vmatpush1.msra.mxu0 0.0
      %1528 = vmatprep.subr.mxu0 0.0
      %1529 = vmatpush1.msra.mxu0 0.0
      %1530 = vmatprep.subr.mxu0 0.0
      %1531 = vmatpush1.msra.mxu0 0.0
      %1532 = vmatprep.subr.mxu0 0.0
      %1533 = vmatpush1.msra.mxu0 0.0
      %1534 = vmatprep.subr.mxu0 0.0
      %1535 = vmatpush1.msra.mxu0 0.0
      %1536 = vmatprep.subr.mxu0 0.0
      %1537 = vmatpush1.msra.mxu0 0.0
      %1538 = vmatprep.subr.mxu0 0.0
      %1539 = vmatpush1.msra.mxu0 0.0
      %1540 = vmatprep.subr.mxu0 0.0
      %1541 = vmatpush1.msra.mxu0 0.0
      %1542 = vmatprep.subr.mxu0 0.0
      %1543 = vmatpush1.msra.mxu0 0.0
      %1544 = vmatprep.subr.mxu0 0.0
      %1545 = vmatpush1.msra.mxu0 0.0
      %1546 = vmatprep.subr.mxu0 0.0
      %1547 = vmatpush1.msra.mxu0 0.0
      %1548 = vmatprep.subr.mxu0 0.0
      %1549 = vmatpush1.msra.mxu0 0.0
      %1550 = vmatprep.subr.mxu0 0.0
      %1551 = vmatpush1.msra.mxu0 0.0
      %1552 = vmatprep.subr.mxu0 0.0
      %1553 = vmatpush1.msra.mxu0 0.0
      %1554 = vmatprep.mubr.f32.mxu0 0.0
      %1555 = vmatmul.mubr.f32.gmra.mrb[0].mxu0 %v1402
      %v1556 = vpop.f32.mrb[0].mxu0
      %v1557 = vadd.f32 0.0, %v1556
      %v1558 = vpop.f32.mrb[0].mxu0
      %1559 = vmatprep.mubr.f32.mxu0 0.0
      %1560 = vmatmul.mubr.f32.gmra.mrb[0].mxu0 %v1405
      %v1561 = vpop.f32.mrb[0].mxu0
      %v1562 = vadd.f32 0.0, %v1561
      %v1563 = vpop.f32.mrb[0].mxu0
      %1564 = vdwg.mxu0
      %v1565 = vadd.f32 %v1366, %v1480
      %v1566 = vadd.f32 %v1367, %v1482
      %v1567 = vadd.f32 %v1368, %v1557
      %v1568 = vadd.f32 %v1369, %v1486
      %v1569 = vadd.f32 %v1370, %v1488
      %v1570 = vadd.f32 %v1371, %v1562
      %s1571 = scalar_lea.vmem %s1, 112
      %v1572 = vld [vmem:[%s1571] sm:$0xff]
      %v1573 = vld [vmem:[%s1571 + $0x8] sm:$0xff]
      %1574 = vrot.lane.b32.xlu0 %v199, 91
      %v1575 = vpop.permute.xlu0 %1574
      %1576 = vrot.lane.b32.xlu0 %v200, 91
      %v1577 = vpop.permute.xlu0 %1576
      %1578 = vrot.lane.b32.xlu0 %v201, 91
      %v1579 = vpop.permute.xlu0 %1578
      %1580 = vrot.lane.b32.xlu0 %v202, 91
      %v1581 = vpop.permute.xlu0 %1580
      %1582 = vrot.lane.b32.xlu0 %v203, 91
      %v1583 = vpop.permute.xlu0 %1582
      %1584 = vrot.lane.b32.xlu0 %v204, 91
      %v1585 = vpop.permute.xlu0 %1584
      %1586 = vrot.lane.b32.xlu0 %v205, 91
      %v1587 = vpop.permute.xlu0 %1586
      %1588 = vrot.lane.b32.xlu0 %v206, 91
      %v1589 = vpop.permute.xlu0 %1588
      %vm1590 = vcmask 744448
      %v1591 = vsel %vm1590, %v1575, %v1577
      %v1592 = vsel %vm1590, %v1577, %v1579
      %v1593 = vsel %vm1590, %v1579, %v1581
      %v1594 = vsel %vm1590, %v1583, %v1585
      %v1595 = vsel %vm1590, %v1585, %v1587
      %v1596 = vsel %vm1590, %v1587, %v1589
      %v1601 = vsel %vm246, %v1572, 0
      %v1604 = vsel %vm246, %v1573, 0
      %v1606 = vsel %vm253, %v1594, 0
      %v1608 = vsel %vm253, %v1595, 0
      %v1610 = vsel %vm253, %v1596, 0
      %1612 = vmatprep.subr.mxu0 %v1592
      %1613 = vmatpush1.msra.mxu0 %v1591
      %1614 = vmatprep.subr.mxu0 %v1608
      %1615 = vmatpush1.msra.mxu0 %v1606
      %1616 = vmatprep.subr.mxu0 0.0
      %1617 = vmatpush1.msra.mxu0 0.0
      %1618 = vmatprep.subr.mxu0 0.0
      %1619 = vmatpush1.msra.mxu0 0.0
      %1620 = vmatprep.subr.mxu0 0.0
      %1621 = vmatpush1.msra.mxu0 0.0
      %1622 = vmatprep.subr.mxu0 0.0
      %1623 = vmatpush1.msra.mxu0 0.0
      %1624 = vmatprep.subr.mxu0 0.0
      %1625 = vmatpush1.msra.mxu0 0.0
      %1626 = vmatprep.subr.mxu0 0.0
      %1627 = vmatpush1.msra.mxu0 0.0
      %1628 = vmatprep.subr.mxu0 0.0
      %1629 = vmatpush1.msra.mxu0 0.0
      %1630 = vmatprep.subr.mxu0 0.0
      %1631 = vmatpush1.msra.mxu0 0.0
      %1632 = vmatprep.subr.mxu0 0.0
      %1633 = vmatpush1.msra.mxu0 0.0
      %1634 = vmatprep.subr.mxu0 0.0
      %1635 = vmatpush1.msra.mxu0 0.0
      %1636 = vmatprep.subr.mxu0 0.0
      %1637 = vmatpush1.msra.mxu0 0.0
      %1638 = vmatprep.subr.mxu0 0.0
      %1639 = vmatpush1.msra.mxu0 0.0
      %1640 = vmatprep.subr.mxu0 0.0
      %1641 = vmatpush1.msra.mxu0 0.0
      %1642 = vmatprep.subr.mxu0 0.0
      %1643 = vmatpush1.msra.mxu0 0.0
      %1644 = vmatprep.subr.mxu0 0.0
      %1645 = vmatpush1.msra.mxu0 0.0
      %1646 = vmatprep.subr.mxu0 0.0
      %1647 = vmatpush1.msra.mxu0 0.0
      %1648 = vmatprep.subr.mxu0 0.0
      %1649 = vmatpush1.msra.mxu0 0.0
      %1650 = vmatprep.subr.mxu0 0.0
      %1651 = vmatpush1.msra.mxu0 0.0
      %1652 = vmatprep.subr.mxu0 0.0
      %1653 = vmatpush1.msra.mxu0 0.0
      %1654 = vmatprep.subr.mxu0 0.0
      %1655 = vmatpush1.msra.mxu0 0.0
      %1656 = vmatprep.subr.mxu0 0.0
      %1657 = vmatpush1.msra.mxu0 0.0
      %1658 = vmatprep.subr.mxu0 0.0
      %1659 = vmatpush1.msra.mxu0 0.0
      %1660 = vmatprep.subr.mxu0 0.0
      %1661 = vmatpush1.msra.mxu0 0.0
      %1662 = vmatprep.subr.mxu0 0.0
      %1663 = vmatpush1.msra.mxu0 0.0
      %1664 = vmatprep.subr.mxu0 0.0
      %1665 = vmatpush1.msra.mxu0 0.0
      %1666 = vmatprep.subr.mxu0 0.0
      %1667 = vmatpush1.msra.mxu0 0.0
      %1668 = vmatprep.subr.mxu0 0.0
      %1669 = vmatpush1.msra.mxu0 0.0
      %1670 = vmatprep.subr.mxu0 0.0
      %1671 = vmatpush1.msra.mxu0 0.0
      %1672 = vmatprep.subr.mxu0 0.0
      %1673 = vmatpush1.msra.mxu0 0.0
      %1674 = vmatprep.subr.mxu0 0.0
      %1675 = vmatpush1.msra.mxu0 0.0
      %1676 = vmatprep.mubr.f32.mxu0 0.0
      %1677 = vmatmul.mubr.f32.gmra.mrb[0].mxu0 %v1601
      %v1678 = vpop.f32.mrb[0].mxu0
      %v1679 = vadd.f32 0.0, %v1678
      %v1680 = vpop.f32.mrb[0].mxu0
      %v1681 = vadd.f32 0.0, %v1680
      %1682 = vmatprep.mubr.f32.mxu0 0.0
      %1683 = vmatmul.mubr.f32.gmra.mrb[0].mxu0 %v1604
      %v1684 = vpop.f32.mrb[0].mxu0
      %v1685 = vadd.f32 0.0, %v1684
      %v1686 = vpop.f32.mrb[0].mxu0
      %v1687 = vadd.f32 0.0, %v1686
      %1688 = vdwg.mxu0
      %1689 = vmatprep.subr.mxu0 0.0
      %1690 = vmatpush1.msra.mxu0 %v1593
      %1691 = vmatprep.subr.mxu0 0.0
      %1692 = vmatpush1.msra.mxu0 %v1610
      %1693 = vmatprep.subr.mxu0 0.0
      %1694 = vmatpush1.msra.mxu0 0.0
      %1695 = vmatprep.subr.mxu0 0.0
      %1696 = vmatpush1.msra.mxu0 0.0
      %1697 = vmatprep.subr.mxu0 0.0
      %1698 = vmatpush1.msra.mxu0 0.0
      %1699 = vmatprep.subr.mxu0 0.0
      %1700 = vmatpush1.msra.mxu0 0.0
      %1701 = vmatprep.subr.mxu0 0.0
      %1702 = vmatpush1.msra.mxu0 0.0
      %1703 = vmatprep.subr.mxu0 0.0
      %1704 = vmatpush1.msra.mxu0 0.0
      %1705 = vmatprep.subr.mxu0 0.0
      %1706 = vmatpush1.msra.mxu0 0.0
      %1707 = vmatprep.subr.mxu0 0.0
      %1708 = vmatpush1.msra.mxu0 0.0
      %1709 = vmatprep.subr.mxu0 0.0
      %1710 = vmatpush1.msra.mxu0 0.0
      %1711 = vmatprep.subr.mxu0 0.0
      %1712 = vmatpush1.msra.mxu0 0.0
      %1713 = vmatprep.subr.mxu0 0.0
      %1714 = vmatpush1.msra.mxu0 0.0
      %1715 = vmatprep.subr.mxu0 0.0
      %1716 = vmatpush1.msra.mxu0 0.0
      %1717 = vmatprep.subr.mxu0 0.0
      %1718 = vmatpush1.msra.mxu0 0.0
      %1719 = vmatprep.subr.mxu0 0.0
      %1720 = vmatpush1.msra.mxu0 0.0
      %1721 = vmatprep.subr.mxu0 0.0
      %1722 = vmatpush1.msra.mxu0 0.0
      %1723 = vmatprep.subr.mxu0 0.0
      %1724 = vmatpush1.msra.mxu0 0.0
      %1725 = vmatprep.subr.mxu0 0.0
      %1726 = vmatpush1.msra.mxu0 0.0
      %1727 = vmatprep.subr.mxu0 0.0
      %1728 = vmatpush1.msra.mxu0 0.0
      %1729 = vmatprep.subr.mxu0 0.0
      %1730 = vmatpush1.msra.mxu0 0.0
      %1731 = vmatprep.subr.mxu0 0.0
      %1732 = vmatpush1.msra.mxu0 0.0
      %1733 = vmatprep.subr.mxu0 0.0
      %1734 = vmatpush1.msra.mxu0 0.0
      %1735 = vmatprep.subr.mxu0 0.0
      %1736 = vmatpush1.msra.mxu0 0.0
      %1737 = vmatprep.subr.mxu0 0.0
      %1738 = vmatpush1.msra.mxu0 0.0
      %1739 = vmatprep.subr.mxu0 0.0
      %1740 = vmatpush1.msra.mxu0 0.0
      %1741 = vmatprep.subr.mxu0 0.0
      %1742 = vmatpush1.msra.mxu0 0.0
      %1743 = vmatprep.subr.mxu0 0.0
      %1744 = vmatpush1.msra.mxu0 0.0
      %1745 = vmatprep.subr.mxu0 0.0
      %1746 = vmatpush1.msra.mxu0 0.0
      %1747 = vmatprep.subr.mxu0 0.0
      %1748 = vmatpush1.msra.mxu0 0.0
      %1749 = vmatprep.subr.mxu0 0.0
      %1750 = vmatpush1.msra.mxu0 0.0
      %1751 = vmatprep.subr.mxu0 0.0
      %1752 = vmatpush1.msra.mxu0 0.0
      %1753 = vmatprep.mubr.f32.mxu0 0.0
      %1754 = vmatmul.mubr.f32.gmra.mrb[0].mxu0 %v1601
      %v1755 = vpop.f32.mrb[0].mxu0
      %v1756 = vadd.f32 0.0, %v1755
      %v1757 = vpop.f32.mrb[0].mxu0
      %1758 = vmatprep.mubr.f32.mxu0 0.0
      %1759 = vmatmul.mubr.f32.gmra.mrb[0].mxu0 %v1604
      %v1760 = vpop.f32.mrb[0].mxu0
      %v1761 = vadd.f32 0.0, %v1760
      %v1762 = vpop.f32.mrb[0].mxu0
      %1763 = vdwg.mxu0
      %v1764 = vadd.f32 %v1565, %v1679
      %v1765 = vadd.f32 %v1566, %v1681
      %v1766 = vadd.f32 %v1567, %v1756
      %v1767 = vadd.f32 %v1568, %v1685
      %v1768 = vadd.f32 %v1569, %v1687
      %v1769 = vadd.f32 %v1570, %v1761
      %s1770 = scalar_lea.vmem %s1, 128
      %v1771 = vld [vmem:[%s1770] sm:$0xff]
      %v1772 = vld [vmem:[%s1770 + $0x8] sm:$0xff]
      %1773 = vrot.lane.b32.xlu0 %v199, 90
      %v1774 = vpop.permute.xlu0 %1773
      %1775 = vrot.lane.b32.xlu0 %v200, 90
      %v1776 = vpop.permute.xlu0 %1775
      %1777 = vrot.lane.b32.xlu0 %v201, 90
      %v1778 = vpop.permute.xlu0 %1777
      %1779 = vrot.lane.b32.xlu0 %v202, 90
      %v1780 = vpop.permute.xlu0 %1779
      %1781 = vrot.lane.b32.xlu0 %v203, 90
      %v1782 = vpop.permute.xlu0 %1781
      %1783 = vrot.lane.b32.xlu0 %v204, 90
      %v1784 = vpop.permute.xlu0 %1783
      %1785 = vrot.lane.b32.xlu0 %v205, 90
      %v1786 = vpop.permute.xlu0 %1785
      %1787 = vrot.lane.b32.xlu0 %v206, 90
      %v1788 = vpop.permute.xlu0 %1787
      %vm1789 = vcmask 736256
      %v1790 = vsel %vm1789, %v1774, %v1776
      %v1791 = vsel %vm1789, %v1776, %v1778
      %v1792 = vsel %vm1789, %v1778, %v1780
      %v1793 = vsel %vm1789, %v1782, %v1784
      %v1794 = vsel %vm1789, %v1784, %v1786
      %v1795 = vsel %vm1789, %v1786, %v1788
      %v1800 = vsel %vm246, %v1771, 0
      %v1803 = vsel %vm246, %v1772, 0
      %v1805 = vsel %vm253, %v1793, 0
      %v1807 = vsel %vm253, %v1794, 0
      %v1809 = vsel %vm253, %v1795, 0
      %1811 = vmatprep.subr.mxu0 %v1791
      %1812 = vmatpush1.msra.mxu0 %v1790
      %1813 = vmatprep.subr.mxu0 %v1807
      %1814 = vmatpush1.msra.mxu0 %v1805
      %1815 = vmatprep.subr.mxu0 0.0
      %1816 = vmatpush1.msra.mxu0 0.0
      %1817 = vmatprep.subr.mxu0 0.0
      %1818 = vmatpush1.msra.mxu0 0.0
      %1819 = vmatprep.subr.mxu0 0.0
      %1820 = vmatpush1.msra.mxu0 0.0
      %1821 = vmatprep.subr.mxu0 0.0
      %1822 = vmatpush1.msra.mxu0 0.0
      %1823 = vmatprep.subr.mxu0 0.0
      %1824 = vmatpush1.msra.mxu0 0.0
      %1825 = vmatprep.subr.mxu0 0.0
      %1826 = vmatpush1.msra.mxu0 0.0
      %1827 = vmatprep.subr.mxu0 0.0
      %1828 = vmatpush1.msra.mxu0 0.0
      %1829 = vmatprep.subr.mxu0 0.0
      %1830 = vmatpush1.msra.mxu0 0.0
      %1831 = vmatprep.subr.mxu0 0.0
      %1832 = vmatpush1.msra.mxu0 0.0
      %1833 = vmatprep.subr.mxu0 0.0
      %1834 = vmatpush1.msra.mxu0 0.0
      %1835 = vmatprep.subr.mxu0 0.0
      %1836 = vmatpush1.msra.mxu0 0.0
      %1837 = vmatprep.subr.mxu0 0.0
      %1838 = vmatpush1.msra.mxu0 0.0
      %1839 = vmatprep.subr.mxu0 0.0
      %1840 = vmatpush1.msra.mxu0 0.0
      %1841 = vmatprep.subr.mxu0 0.0
      %1842 = vmatpush1.msra.mxu0 0.0
      %1843 = vmatprep.subr.mxu0 0.0
      %1844 = vmatpush1.msra.mxu0 0.0
      %1845 = vmatprep.subr.mxu0 0.0
      %1846 = vmatpush1.msra.mxu0 0.0
      %1847 = vmatprep.subr.mxu0 0.0
      %1848 = vmatpush1.msra.mxu0 0.0
      %1849 = vmatprep.subr.mxu0 0.0
      %1850 = vmatpush1.msra.mxu0 0.0
      %1851 = vmatprep.subr.mxu0 0.0
      %1852 = vmatpush1.msra.mxu0 0.0
      %1853 = vmatprep.subr.mxu0 0.0
      %1854 = vmatpush1.msra.mxu0 0.0
      %1855 = vmatprep.subr.mxu0 0.0
      %1856 = vmatpush1.msra.mxu0 0.0
      %1857 = vmatprep.subr.mxu0 0.0
      %1858 = vmatpush1.msra.mxu0 0.0
      %1859 = vmatprep.subr.mxu0 0.0
      %1860 = vmatpush1.msra.mxu0 0.0
      %1861 = vmatprep.subr.mxu0 0.0
      %1862 = vmatpush1.msra.mxu0 0.0
      %1863 = vmatprep.subr.mxu0 0.0
      %1864 = vmatpush1.msra.mxu0 0.0
      %1865 = vmatprep.subr.mxu0 0.0
      %1866 = vmatpush1.msra.mxu0 0.0
      %1867 = vmatprep.subr.mxu0 0.0
      %1868 = vmatpush1.msra.mxu0 0.0
      %1869 = vmatprep.subr.mxu0 0.0
      %1870 = vmatpush1.msra.mxu0 0.0
      %1871 = vmatprep.subr.mxu0 0.0
      %1872 = vmatpush1.msra.mxu0 0.0
      %1873 = vmatprep.subr.mxu0 0.0
      %1874 = vmatpush1.msra.mxu0 0.0
      %1875 = vmatprep.mubr.f32.mxu0 0.0
      %1876 = vmatmul.mubr.f32.gmra.mrb[0].mxu0 %v1800
      %v1877 = vpop.f32.mrb[0].mxu0
      %v1878 = vadd.f32 0.0, %v1877
      %v1879 = vpop.f32.mrb[0].mxu0
      %v1880 = vadd.f32 0.0, %v1879
      %1881 = vmatprep.mubr.f32.mxu0 0.0
      %1882 = vmatmul.mubr.f32.gmra.mrb[0].mxu0 %v1803
      %v1883 = vpop.f32.mrb[0].mxu0
      %v1884 = vadd.f32 0.0, %v1883
      %v1885 = vpop.f32.mrb[0].mxu0
      %v1886 = vadd.f32 0.0, %v1885
      %1887 = vdwg.mxu0
      %1888 = vmatprep.subr.mxu0 0.0
      %1889 = vmatpush1.msra.mxu0 %v1792
      %1890 = vmatprep.subr.mxu0 0.0
      %1891 = vmatpush1.msra.mxu0 %v1809
      %1892 = vmatprep.subr.mxu0 0.0
      %1893 = vmatpush1.msra.mxu0 0.0
      %1894 = vmatprep.subr.mxu0 0.0
      %1895 = vmatpush1.msra.mxu0 0.0
      %1896 = vmatprep.subr.mxu0 0.0
      %1897 = vmatpush1.msra.mxu0 0.0
      %1898 = vmatprep.subr.mxu0 0.0
      %1899 = vmatpush1.msra.mxu0 0.0
      %1900 = vmatprep.subr.mxu0 0.0
      %1901 = vmatpush1.msra.mxu0 0.0
      %1902 = vmatprep.subr.mxu0 0.0
      %1903 = vmatpush1.msra.mxu0 0.0
      %1904 = vmatprep.subr.mxu0 0.0
      %1905 = vmatpush1.msra.mxu0 0.0
      %1906 = vmatprep.subr.mxu0 0.0
      %1907 = vmatpush1.msra.mxu0 0.0
      %1908 = vmatprep.subr.mxu0 0.0
      %1909 = vmatpush1.msra.mxu0 0.0
      %1910 = vmatprep.subr.mxu0 0.0
      %1911 = vmatpush1.msra.mxu0 0.0
      %1912 = vmatprep.subr.mxu0 0.0
      %1913 = vmatpush1.msra.mxu0 0.0
      %1914 = vmatprep.subr.mxu0 0.0
      %1915 = vmatpush1.msra.mxu0 0.0
      %1916 = vmatprep.subr.mxu0 0.0
      %1917 = vmatpush1.msra.mxu0 0.0
      %1918 = vmatprep.subr.mxu0 0.0
      %1919 = vmatpush1.msra.mxu0 0.0
      %1920 = vmatprep.subr.mxu0 0.0
      %1921 = vmatpush1.msra.mxu0 0.0
      %1922 = vmatprep.subr.mxu0 0.0
      %1923 = vmatpush1.msra.mxu0 0.0
      %1924 = vmatprep.subr.mxu0 0.0
      %1925 = vmatpush1.msra.mxu0 0.0
      %1926 = vmatprep.subr.mxu0 0.0
      %1927 = vmatpush1.msra.mxu0 0.0
      %1928 = vmatprep.subr.mxu0 0.0
      %1929 = vmatpush1.msra.mxu0 0.0
      %1930 = vmatprep.subr.mxu0 0.0
      %1931 = vmatpush1.msra.mxu0 0.0
      %1932 = vmatprep.subr.mxu0 0.0
      %1933 = vmatpush1.msra.mxu0 0.0
      %1934 = vmatprep.subr.mxu0 0.0
      %1935 = vmatpush1.msra.mxu0 0.0
      %1936 = vmatprep.subr.mxu0 0.0
      %1937 = vmatpush1.msra.mxu0 0.0
      %1938 = vmatprep.subr.mxu0 0.0
      %1939 = vmatpush1.msra.mxu0 0.0
      %1940 = vmatprep.subr.mxu0 0.0
      %1941 = vmatpush1.msra.mxu0 0.0
      %1942 = vmatprep.subr.mxu0 0.0
      %1943 = vmatpush1.msra.mxu0 0.0
      %1944 = vmatprep.subr.mxu0 0.0
      %1945 = vmatpush1.msra.mxu0 0.0
      %1946 = vmatprep.subr.mxu0 0.0
      %1947 = vmatpush1.msra.mxu0 0.0
      %1948 = vmatprep.subr.mxu0 0.0
      %1949 = vmatpush1.msra.mxu0 0.0
      %1950 = vmatprep.subr.mxu0 0.0
      %1951 = vmatpush1.msra.mxu0 0.0
      %1952 = vmatprep.mubr.f32.mxu0 0.0
      %1953 = vmatmul.mubr.f32.gmra.mrb[0].mxu0 %v1800
      %v1954 = vpop.f32.mrb[0].mxu0
      %v1955 = vadd.f32 0.0, %v1954
      %v1956 = vpop.f32.mrb[0].mxu0
      %1957 = vmatprep.mubr.f32.mxu0 0.0
      %1958 = vmatmul.mubr.f32.gmra.mrb[0].mxu0 %v1803
      %v1959 = vpop.f32.mrb[0].mxu0
      %v1960 = vadd.f32 0.0, %v1959
      %v1961 = vpop.f32.mrb[0].mxu0
      %1962 = vdwg.mxu0
      %v1963 = vadd.f32 %v1764, %v1878
      %v1964 = vadd.f32 %v1765, %v1880
      %v1965 = vadd.f32 %v1766, %v1955
      %v1966 = vadd.f32 %v1767, %v1884
      %v1967 = vadd.f32 %v1768, %v1886
      %v1968 = vadd.f32 %v1769, %v1960
      %v1969 = vld [vmem:[%s2] sm:$0xff]
      %v1970 = vld [vmem:[%s2 + $0x8] sm:$0xff]
      %1972 = vset.pattern.permute.xlu0 0
      %1973 = vperm.xlu0 %1972, %v1969
      %v1974 = vpop.permute.xlu0 %1973
      %1977 = vset.pattern.permute.xlu0 0
      %1978 = vperm.xlu0 %1977, %v1970
      %v1979 = vpop.permute.xlu0 %1978
      %v1981 = vadd.f32 %v1963, %v1974
      %v1982 = vadd.f32 %v1964, %v1974
      %v1983 = vadd.f32 %v1965, %v1974
      %v1984 = vadd.f32 %v1966, %v1979
      %v1985 = vadd.f32 %v1967, %v1979
      %v1986 = vadd.f32 %v1968, %v1979
      %v1987 = vmul.f32 %v1981, 0.5
      %v1988 = vmul.f32 %v1982, 0.5
      %v1989 = vmul.f32 %v1983, 0.5
      %v1990 = vmul.f32 %v1984, 0.5
      %v1991 = vmul.f32 %v1985, 0.5
      %v1992 = vmul.f32 %v1986, 0.5
      %v1993 = vtanh.pop %v1987
      %v1994 = vtanh.pop %v1988
      %v1995 = vtanh.pop %v1989
      %v1996 = vtanh.pop %v1990
      %v1997 = vtanh.pop %v1991
      %v1998 = vtanh.pop %v1992
      %v1999 = vmul.f32 %v1993, 0.5
      %v2000 = vmul.f32 %v1994, 0.5
      %v2001 = vmul.f32 %v1995, 0.5
      %v2002 = vmul.f32 %v1996, 0.5
      %v2003 = vmul.f32 %v1997, 0.5
      %v2004 = vmul.f32 %v1998, 0.5
      %v2005 = vadd.f32 %v1999, 0.5
      %v2006 = vadd.f32 %v2000, 0.5
      %v2007 = vadd.f32 %v2001, 0.5
      %v2008 = vadd.f32 %v2002, 0.5
      %v2009 = vadd.f32 %v2003, 0.5
      %v2010 = vadd.f32 %v2004, 0.5
      %2011 = vst [vmem:[%s192] sm:$0xff] %v2005
      %2012 = vst [vmem:[%s192 + $0x8] sm:$0xff] %v2006
      %2013 = vst [vmem:[%s192 + $0x10] sm:$0xff] %v2007
      %2014 = vst [vmem:[%s192 + $0x18] sm:$0xf] %v2008
      %2015 = vst [vmem:[%s192 + $0x20] sm:$0xf] %v2009
      %2016 = vst [vmem:[%s192 + $0x28] sm:$0xf] %v2010
      %s2017 = smul.u32 3, %s19
      %p2018 = scmp.lt.s32.totalorder %s18, 1
      %s2019 = scalar_select %p2018, %s18, 1
      %p2020 = scmp.lt.s32.totalorder %s2017, 2
      %s2021 = scalar_select %p2020, %s2017, 2
      %s2022 = smul.addr %s2019, 6
      %s2023 = sadd.s32 %s2021, %s2022
      %s2024 = smul.addr %s2023, 8
      %s2025 = scalar_lea.vmem %s3, %s2024
      // Predicated region
      $region33: #{simple_enhancer_forward.1} parent=31 // pred_check
        %p2026 = pneg %p114
      $region34: #{simple_enhancer_forward.1} parent=31 // pred_check_branch
        %2028 = sbr.rel (%p2026) target = $region36
      $region35: #{simple_enhancer_forward.1} parent=31 // pred_region
        %s2029 = smul.u32 3, %s19
      $region36: #{simple_enhancer_forward.1} parent=31 // pred_fallthru
        _
    $region32: #{simple_enhancer_forward.1} parent=5 // pred_fallthru
      _
    %p2030 = scmp.le.s32.totalorder 2, %s9
    // Predicated region
    $region37: #{simple_enhancer_forward.1} parent=5 // pred_check
      %p2031 = pneg %p2030
    $region38: #{simple_enhancer_forward.1} parent=5 // pred_check_branch
      %2033 = sbr.rel (%p2031) target = $region40
    $region39: #{simple_enhancer_forward.1} parent=5 // pred_region
      %s2034 = ssub.s32 %s9, 2
      // Predicated region
      $region41: #{simple_enhancer_forward.1} parent=39 // pred_check
        %p2035 = pneg %p120
      $region42: #{simple_enhancer_forward.1} parent=39 // pred_check_branch
        %2037 = sbr.rel (%p2035) target = $region44
      $region43: #{simple_enhancer_forward.1} parent=39 // pred_region
        %s2038 = smul.u32 3, %s21
        %p2039 = scmp.lt.s32.totalorder %s20, 1
        %s2040 = scalar_select %p2039, %s20, 1
        %p2041 = scmp.lt.s32.totalorder %s2038, 2
        %s2042 = scalar_select %p2041, %s2038, 2
        %s2043 = smul.addr %s2040, 6
        %s2044 = sadd.s32 %s2042, %s2043
        %s2045 = smul.addr %s2044, 8
        %s2046 = scalar_lea.vmem %s3, %s2045
      $region44: #{simple_enhancer_forward.1} parent=39 // pred_fallthru
        _
    $region40: #{simple_enhancer_forward.1} parent=5 // pred_fallthru
      _
  $region6: #{simple_enhancer_forward.1} parent=0 // loop_footer
    %s13 = sadd.s32 1, %s9
  $region7: #{simple_enhancer_forward.1} parent=0 // loop_footer_branch
    %8 = sbr.rel target = $region3
  $region8: #{simple_enhancer_forward.1} parent=0 // loop_exit
    _

</llo_original>
